<compile_context>
chip_gen: v5e
topology: v5e:2x2
jax: 0.10.0
libtpu: 0.0.40
codegen_flags: <defaults>
</compile_context>

<pallas_src>
import jax
import jax.numpy as jnp
from jax.experimental import pallas as pl
from jax.experimental.pallas import tpu as pltpu

H = 32  # controller hidden size

VMEM = pl.BlockSpec(memory_space=pltpu.MemorySpace.VMEM)


# ---------------------------------------------------------------------------
# Static layout of the packed "misc" weight blob (rows x W lanes, f32)
# ---------------------------------------------------------------------------
def _misc_layout(n_inc, n_op, num_ops):
    W = max(H, num_ops, n_inc)
    off, r = {}, 0
    off['emb_out_w'] = r; r += H                 # (H, H)    link_embedding_out.weight^T
    off['emb_out_b'] = r; r += 1                 # (1, H)    link_embedding_out.bias
    off['w_att'] = r;     r += n_inc             # (n_inc,H) link_attention[idx].weight
    off['b_att'] = r;     r += 1                 # (1,n_inc) link_attention[idx].bias
    off['choice_w'] = r;  r += n_op * H          # n_op x (H, num_ops)
    off['choice_b'] = r;  r += n_op              # (n_op, num_ops)
    off['op_emb'] = r;    r += n_op * num_ops    # n_op x (num_ops, H)
    return off, r, W


# ---------------------------------------------------------------------------
# Fused kernel builder (all config static / unrolled)
# ---------------------------------------------------------------------------
def _build_kernel(incoming, n_op, num_ops, n_prev, off, out_w):
    n_inc = len(incoming)

    def padw(row):
        c = row.shape[1]
        if c == out_w:
            return row
        return jnp.concatenate(
            [row, jnp.zeros((row.shape[0], out_w - c), row.dtype)], axis=1)

    def row_argmax(scores, n):
        # index of the max along lanes (lowest index on ties), as (1,1) int32
        iota = jax.lax.broadcasted_iota(jnp.int32, scores.shape, 1)
        m = jnp.max(scores, axis=1, keepdims=True)
        return jnp.min(jnp.where(scores >= m, iota, n), axis=1, keepdims=True)

    def kernel(noise_ref, state_ref, w_big_ref, b_big_ref, misc_ref,
               f32_out_ref, choice_out_ref):
        # ---- unpack state blob --------------------------------------------
        x = state_ref[0:1, :]
        h = state_ref[1:2, :]
        c = state_ref[2:3, :]
        prev_attention = [state_ref[3 + p:4 + p, :] for p in range(n_prev)]

        w_big = w_big_ref[...]                      # (2H, 5H) bf16: gates | emb_in
        b_big = b_big_ref[...]                      # (1, 5H)  f32
        emb_out_w = misc_ref[off['emb_out_w']:off['emb_out_w'] + H, :H]
        emb_out_b = misc_ref[off['emb_out_b']:off['emb_out_b'] + 1, :H]

        def lstm_step(x, h, c):
            # One (1,2H)@(2H,5H) bf16 MXU dot: LSTM gates + link_embedding_in.
            xh = jnp.concatenate([x, h], axis=1).astype(jnp.bfloat16)
            z = jnp.dot(xh, w_big, preferred_element_type=jnp.float32) + b_big
            gates = z[:, :4 * H]
            emb_in = z[:, 4 * H:]
            sig = jax.nn.sigmoid(gates)             # full-vreg EUP
            tnh = jnp.tanh(gates)                   # full-vreg EUP
            i = sig[:, 0 * H:1 * H]
            f = sig[:, 1 * H:2 * H]
            g = tnh[:, 2 * H:3 * H]
            o = sig[:, 3 * H:4 * H]
            c_new = f * c + i * g
            h_new = o * jnp.tanh(c_new)
            return h_new, c_new, emb_in

        history = h
        emb_out_rows, inc_logit_rows, op_logit_rows = [], [], []
        inc_choices, op_choices = [], []

        # ---- incoming-link decisions (statically unrolled) -----------------
        for d, indices in enumerate(incoming):
            h, c, embedding_in = lstm_step(x, h, c)
            history = h
            # nn.LSTM hidden == (h, c); hidden[-1] is literally c.
            embedding_out = (jnp.dot(c, emb_out_w,
                                     preferred_element_type=jnp.float32)
                             + emb_out_b)
            prev_attention.append(embedding_out)
            emb_out_rows.append(embedding_out)

            w_row = misc_ref[off['w_att'] + d:off['w_att'] + d + 1, :H]   # (1,H)
            b_val = misc_ref[off['b_att']:off['b_att'] + 1, d:d + 1]      # (1,1)
            cand = []
            for a in indices:
                s = jnp.tanh(embedding_in + prev_attention[a])            # (1,H)
                cand.append(jnp.sum(s * w_row, axis=1, keepdims=True))    # (1,1)
            n_c = len(indices)
            logits = jnp.concatenate(cand, axis=1) + b_val                # (1,C)
            noise = noise_ref[d:d + 1, :n_c]
            choice = row_argmax(logits + noise, n_c)                      # (1,1)
            inc_choices.append(choice)
            inc_logit_rows.append(padw(logits))
            # TODO(synk): history has a single timestep, so history[choice]
            # clamps to index 0 (== h), as in the previous implementation.
            x = history

        # ---- operation decisions (statically unrolled) ----------------------
        for d in range(n_op):
            h, c, _ = lstm_step(x, h, c)
            history = h
            cw0 = off['choice_w'] + d * H
            w_ch = misc_ref[cw0:cw0 + H, :num_ops]                        # (H, num_ops)
            b_ch = misc_ref[off['choice_b'] + d:off['choice_b'] + d + 1, :num_ops]
            logits = (jnp.dot(c, w_ch, preferred_element_type=jnp.float32)
                      + b_ch)                                             # (1, num_ops)
            noise = noise_ref[n_inc + d:n_inc + d + 1, :num_ops]
            choice = row_argmax(logits + noise, num_ops)                  # (1,1)
            op_choices.append(choice)
            op_logit_rows.append(padw(logits))
            # embedding lookup as a masked reduce (no dynamic indexing needed)
            oe0 = off['op_emb'] + d * num_ops
            table = misc_ref[oe0:oe0 + num_ops, :H]                       # (num_ops, H)
            row_iota = jax.lax.broadcasted_iota(jnp.int32, (num_ops, 1), 0)
            x = jnp.sum(jnp.where(row_iota == choice, table, 0.0),
                        axis=0, keepdims=True)                            # (1, H)

        # ---- single writeback of everything ---------------------------------
        rows = ([padw(history), padw(h), padw(c)]
                + [padw(r) for r in emb_out_rows]
                + inc_logit_rows + op_logit_rows)
        f32_out_ref[...] = jnp.concatenate(rows, axis=0)
        choice_out_ref[...] = jnp.concatenate(inc_choices + op_choices, axis=1)

    return kernel


# ---------------------------------------------------------------------------
# Parameter init (deterministic, synthetic) — packed / fused layouts
# ---------------------------------------------------------------------------
def init_params(key, incoming, operations, num_ops):
    n_inc = len(incoming)
    n_op = len(operations)
    keys = iter(jax.random.split(key, 16))

    def nrm(shape):
        return 0.1 * jax.random.normal(next(keys), shape, jnp.float32)

    # raw synthetic parameters (mirroring the PyTorch submodules)
    w_lstm = nrm((2 * H, 4 * H))      # [x|h] rows, gate columns i,f,g,o
    b_lstm = nrm((1, 4 * H))
    emb_in_w = nrm((H, H));  emb_in_b = nrm((1, H))
    emb_out_w = nrm((H, H)); emb_out_b = nrm((1, H))
    w_att = nrm((n_inc, H)); b_att = nrm((1, n_inc))
    choice_w = nrm((n_op, H, num_ops))
    choice_b = nrm((n_op, num_ops))
    op_emb = nrm((n_op, num_ops, H))

    # fused LSTM + link_embedding_in weight: (2H, 4H + H), bf16 for the MXU
    emb_in_block = jnp.concatenate([emb_in_w, jnp.zeros((H, H), jnp.float32)],
                                   axis=0)          # h-rows contribute 0 to emb_in
    w_big = jnp.concatenate([w_lstm, emb_in_block], axis=1).astype(jnp.bfloat16)
    b_big = jnp.concatenate([b_lstm, emb_in_b], axis=1)

    # misc weight blob (everything else), lane-aligned to W
    off, n_rows, W = _misc_layout(n_inc, n_op, num_ops)

    def padw(a):
        return jnp.pad(a, ((0, 0), (0, W - a.shape[1])))

    rows = [padw(emb_out_w), padw(emb_out_b), padw(w_att), padw(b_att)]
    for d in range(n_op):
        rows.append(padw(choice_w[d]))
    rows.append(padw(choice_b))
    for d in range(n_op):
        rows.append(padw(op_emb[d]))
    misc = jnp.concatenate(rows, axis=0)
    assert misc.shape == (n_rows, W)

    return {'w_big': w_big, 'b_big': b_big, 'misc': misc}


# ---------------------------------------------------------------------------
# Forward pass mirroring _Manifestation.forward (single fused kernel, jitted)
# ---------------------------------------------------------------------------
def make_manifestation(incoming, operations, num_ops):
    incoming = tuple(tuple(int(i) for i in ind) for ind in incoming)
    n_inc = len(incoming)
    n_op = len(operations)
    max_c = max(len(ind) for ind in incoming)
    n_dec = n_inc + n_op
    off, _, _ = _misc_layout(n_inc, n_op, num_ops)
    out_w = max(H, max_c, num_ops)
    n_out_rows = 3 + 2 * n_inc + n_op

    @jax.jit
    def _forward(params, x, hidden, prev_attention, key):
        h, c = hidden
        n_prev = len(prev_attention)                 # static (pytree structure)
        state = jnp.concatenate([x, h, c] + list(prev_attention), axis=0)
        # All Gumbel noise drawn once (independent of the decisions).
        noise = jax.random.gumbel(key, (n_dec, out_w), jnp.float32)

        kernel = _build_kernel(incoming, n_op, num_ops, n_prev, off, out_w)
        f32_out, choices = pl.pallas_call(
            kernel,
            out_shape=(
                jax.ShapeDtypeStruct((n_out_rows, out_w), jnp.float32),
                jax.ShapeDtypeStruct((1, n_dec), jnp.int32),
            ),
            in_specs=[VMEM] * 5,
            out_specs=(VMEM, VMEM),
        )(noise, state, params['w_big'], params['b_big'], params['misc'])

        history = f32_out[0:1, :H]
        h_out = f32_out[1:2, :H]
        c_out = f32_out[2:3, :H]
        emb_base, inc_base, op_base = 3, 3 + n_inc, 3 + 2 * n_inc
        emb_outs = f32_out[emb_base:inc_base, :H]
        inc_logits = f32_out[inc_base:op_base, :max_c]   # row d: first len(incoming[d]) valid
        op_logits = f32_out[op_base:, :num_ops]

        # TODO(synk): the PyTorch trace holds Python lists of per-decision
        # tensors; we return the equivalent stacked arrays (perf item 10).
        trace = {
            'incoming': choices[0, :n_inc],
            'operations': choices[0, n_inc:],
            'incoming_logits': inc_logits,
            'operations_logits': op_logits,
        }
        # Mirrors the PyTorch in-place prev_attention.append side effect.
        new_prev = list(prev_attention) + [emb_outs[i:i + 1, :]
                                           for i in range(n_inc)]
        return history, (h_out, c_out), trace, new_prev

    return _forward


# ---------------------------------------------------------------------------
if __name__ == "__main__":
    key = jax.random.PRNGKey(0)
    pkey, xkey, skey = jax.random.split(key, 3)

    num_ops = 5
    incoming = [[0], [0, 1], [0, 1, 2]]       # 3 link decisions, growing anchor sets
    operations = list(range(3))               # 3 operation decisions

    params = init_params(pkey, incoming, operations, num_ops)
    fwd = make_manifestation(incoming, operations, num_ops)

    x = jax.random.normal(xkey, (1, H), jnp.float32)
    h0 = jnp.zeros((1, H), jnp.float32)
    c0 = jnp.zeros((1, H), jnp.float32)
    prev_attention = []                        # starts empty; appended in-kernel

    history, hidden, trace, prev_attention = fwd(
        params, x, (h0, c0), prev_attention, skey)

    jax.block_until_ready((history, hidden, trace, prev_attention))
    print("KERNEL_OK")
</pallas_src>

<mosaic_0001>
module attributes {stable_mosaic.version = 11 : i64} {
  func.func @kernel(%arg0: memref<6x32xf32, #tpu.memory_space<vmem>>, %arg1: memref<3x32xf32, #tpu.memory_space<vmem>>, %arg2: memref<64x160xbf16, #tpu.memory_space<vmem>>, %arg3: memref<1x160xf32, #tpu.memory_space<vmem>>, %arg4: memref<151x32xf32, #tpu.memory_space<vmem>>, %arg5: memref<12x32xf32, #tpu.memory_space<vmem>>, %arg6: memref<1x6xi32, #tpu.memory_space<vmem>>) attributes {dimension_semantics = [], scalar_prefetch = 0 : i64, scratch_operands = 0 : i64, tpu.core_type = #tpu.core_type<tc>} {
    %c0 = arith.constant 0 : index
    %c0_0 = arith.constant 0 : index
    %0 = vector.load %arg1[%c0, %c0_0] : memref<3x32xf32, #tpu.memory_space<vmem>>, vector<1x32xf32>
    %c1 = arith.constant 1 : index
    %c0_1 = arith.constant 0 : index
    %1 = vector.load %arg1[%c1, %c0_1] : memref<3x32xf32, #tpu.memory_space<vmem>>, vector<1x32xf32>
    %c2 = arith.constant 2 : index
    %c0_2 = arith.constant 0 : index
    %2 = vector.load %arg1[%c2, %c0_2] : memref<3x32xf32, #tpu.memory_space<vmem>>, vector<1x32xf32>
    %c0_3 = arith.constant 0 : index
    %c0_4 = arith.constant 0 : index
    %3 = vector.load %arg2[%c0_3, %c0_4] : memref<64x160xbf16, #tpu.memory_space<vmem>>, vector<64x160xbf16>
    %c0_5 = arith.constant 0 : index
    %c0_6 = arith.constant 0 : index
    %4 = vector.load %arg3[%c0_5, %c0_6] : memref<1x160xf32, #tpu.memory_space<vmem>>, vector<1x160xf32>
    %c0_7 = arith.constant 0 : index
    %c0_8 = arith.constant 0 : index
    %5 = vector.load %arg4[%c0_7, %c0_8] : memref<151x32xf32, #tpu.memory_space<vmem>>, vector<32x32xf32>
    %c32 = arith.constant 32 : index
    %c0_9 = arith.constant 0 : index
    %6 = vector.load %arg4[%c32, %c0_9] : memref<151x32xf32, #tpu.memory_space<vmem>>, vector<1x32xf32>
    %7 = tpu.concatenate %0, %1 in 1 : vector<1x32xf32>, vector<1x32xf32> -> vector<1x64xf32>
    %8 = arith.truncf %7 : vector<1x64xf32> to vector<1x64xbf16>
    %cst = arith.constant dense<0.000000e+00> : vector<1x160xf32>
    %9 = tpu.matmul %8, %3, %cst {dimension_numbers = #tpu.dot_dimension_numbers<[1], [0], [0], [1], [0, 0, 1, 1], [], []>} : vector<1x64xbf16>, vector<64x160xbf16>, vector<1x160xf32> -> vector<1x160xf32>
    %10 = arith.addf %9, %4 : vector<1x160xf32>
    %11 = vector.extract_strided_slice %10 {offsets = [0, 0], sizes = [1, 128], strides = [1, 1]} : vector<1x160xf32> to vector<1x128xf32>
    %12 = vector.extract_strided_slice %10 {offsets = [0, 128], sizes = [1, 32], strides = [1, 1]} : vector<1x160xf32> to vector<1x32xf32>
    %13 = arith.negf %11 : vector<1x128xf32>
    %14 = math.exp %13 : vector<1x128xf32>
    %cst_10 = arith.constant 1.000000e+00 : f32
    %15 = vector.broadcast %cst_10 : f32 to vector<1x128xf32>
    %16 = arith.addf %15, %14 : vector<1x128xf32>
    %17 = arith.divf %15, %16 : vector<1x128xf32>
    %18 = math.tanh %11 : vector<1x128xf32>
    %19 = vector.extract_strided_slice %17 {offsets = [0, 0], sizes = [1, 32], strides = [1, 1]} : vector<1x128xf32> to vector<1x32xf32>
    %20 = vector.extract_strided_slice %17 {offsets = [0, 32], sizes = [1, 32], strides = [1, 1]} : vector<1x128xf32> to vector<1x32xf32>
    %21 = vector.extract_strided_slice %18 {offsets = [0, 64], sizes = [1, 32], strides = [1, 1]} : vector<1x128xf32> to vector<1x32xf32>
    %22 = vector.extract_strided_slice %17 {offsets = [0, 96], sizes = [1, 32], strides = [1, 1]} : vector<1x128xf32> to vector<1x32xf32>
    %23 = arith.mulf %20, %2 : vector<1x32xf32>
    %24 = arith.mulf %19, %21 : vector<1x32xf32>
    %25 = arith.addf %23, %24 : vector<1x32xf32>
    %26 = math.tanh %25 : vector<1x32xf32>
    %27 = arith.mulf %22, %26 : vector<1x32xf32>
    %cst_11 = arith.constant dense<0.000000e+00> : vector<1x32xf32>
    %28 = tpu.matmul %25, %5, %cst_11 {dimension_numbers = #tpu.dot_dimension_numbers<[1], [0], [0], [1], [0, 0, 1, 1], [], []>} : vector<1x32xf32>, vector<32x32xf32>, vector<1x32xf32> -> vector<1x32xf32>
    %29 = arith.addf %28, %6 : vector<1x32xf32>
    %c33 = arith.constant 33 : index
    %c0_12 = arith.constant 0 : index
    %30 = vector.load %arg4[%c33, %c0_12] : memref<151x32xf32, #tpu.memory_space<vmem>>, vector<1x32xf32>
    %c36 = arith.constant 36 : index
    %c0_13 = arith.constant 0 : index
    %31 = vector.load %arg4[%c36, %c0_13] : memref<151x32xf32, #tpu.memory_space<vmem>>, vector<1x1xf32>
    %32 = arith.addf %12, %29 : vector<1x32xf32>
    %33 = math.tanh %32 : vector<1x32xf32>
    %34 = arith.mulf %33, %30 : vector<1x32xf32>
    %cst_14 = arith.constant dense<0.000000e+00> : vector<1xf32>
    %35 = vector.multi_reduction <add>, %34, %cst_14 [1] : vector<1x32xf32> to vector<1xf32>
    %36 = vector.shape_cast %35 : vector<1xf32> to vector<1x1xf32>
    %37 = arith.addf %36, %31 : vector<1x1xf32>
    %c0_15 = arith.constant 0 : index
    %c0_16 = arith.constant 0 : index
    %38 = vector.load %arg0[%c0_15, %c0_16] : memref<6x32xf32, #tpu.memory_space<vmem>>, vector<1x1xf32>
    %39 = arith.addf %37, %38 : vector<1x1xf32>
    %40 = tpu.iota {dimensions = array<i32: 1>} : vector<1x1xi32>
    %cst_17 = arith.constant dense<0xFF800000> : vector<1xf32>
    %41 = vector.multi_reduction <maximumf>, %39, %cst_17 [1] : vector<1x1xf32> to vector<1xf32>
    %42 = vector.shape_cast %41 : vector<1xf32> to vector<1x1xf32>
    %43 = arith.cmpf oge, %39, %42 : vector<1x1xf32>
    %c1_i32 = arith.constant 1 : i32
    %44 = vector.broadcast %c1_i32 : i32 to vector<1x1xi32>
    %45 = arith.select %43, %40, %44 : vector<1x1xi1>, vector<1x1xi32>
    %cst_18 = arith.constant dense<2147483647> : vector<1xi32>
    %46 = vector.multi_reduction <minsi>, %45, %cst_18 [1] : vector<1x1xi32> to vector<1xi32>
    %47 = vector.shape_cast %46 : vector<1xi32> to vector<1x1xi32>
    %cst_19 = arith.constant 0.000000e+00 : f32
    %48 = vector.broadcast %cst_19 : f32 to vector<1x31xf32>
    %49 = tpu.concatenate %37, %48 in 1 : vector<1x1xf32>, vector<1x31xf32> -> vector<1x32xf32>
    %50 = tpu.concatenate %27, %27 in 1 : vector<1x32xf32>, vector<1x32xf32> -> vector<1x64xf32>
    %51 = arith.truncf %50 : vector<1x64xf32> to vector<1x64xbf16>
    %cst_20 = arith.constant dense<0.000000e+00> : vector<1x160xf32>
    %52 = tpu.matmul %51, %3, %cst_20 {dimension_numbers = #tpu.dot_dimension_numbers<[1], [0], [0], [1], [0, 0, 1, 1], [], []>} : vector<1x64xbf16>, vector<64x160xbf16>, vector<1x160xf32> -> vector<1x160xf32>
    %53 = arith.addf %52, %4 : vector<1x160xf32>
    %54 = vector.extract_strided_slice %53 {offsets = [0, 0], sizes = [1, 128], strides = [1, 1]} : vector<1x160xf32> to vector<1x128xf32>
    %55 = vector.extract_strided_slice %53 {offsets = [0, 128], sizes = [1, 32], strides = [1, 1]} : vector<1x160xf32> to vector<1x32xf32>
    %56 = arith.negf %54 : vector<1x128xf32>
    %57 = math.exp %56 : vector<1x128xf32>
    %cst_21 = arith.constant 1.000000e+00 : f32
    %58 = vector.broadcast %cst_21 : f32 to vector<1x128xf32>
    %59 = arith.addf %58, %57 : vector<1x128xf32>
    %60 = arith.divf %58, %59 : vector<1x128xf32>
    %61 = math.tanh %54 : vector<1x128xf32>
    %62 = vector.extract_strided_slice %60 {offsets = [0, 0], sizes = [1, 32], strides = [1, 1]} : vector<1x128xf32> to vector<1x32xf32>
    %63 = vector.extract_strided_slice %60 {offsets = [0, 32], sizes = [1, 32], strides = [1, 1]} : vector<1x128xf32> to vector<1x32xf32>
    %64 = vector.extract_strided_slice %61 {offsets = [0, 64], sizes = [1, 32], strides = [1, 1]} : vector<1x128xf32> to vector<1x32xf32>
    %65 = vector.extract_strided_slice %60 {offsets = [0, 96], sizes = [1, 32], strides = [1, 1]} : vector<1x128xf32> to vector<1x32xf32>
    %66 = arith.mulf %63, %25 : vector<1x32xf32>
    %67 = arith.mulf %62, %64 : vector<1x32xf32>
    %68 = arith.addf %66, %67 : vector<1x32xf32>
    %69 = math.tanh %68 : vector<1x32xf32>
    %70 = arith.mulf %65, %69 : vector<1x32xf32>
    %cst_22 = arith.constant dense<0.000000e+00> : vector<1x32xf32>
    %71 = tpu.matmul %68, %5, %cst_22 {dimension_numbers = #tpu.dot_dimension_numbers<[1], [0], [0], [1], [0, 0, 1, 1], [], []>} : vector<1x32xf32>, vector<32x32xf32>, vector<1x32xf32> -> vector<1x32xf32>
    %72 = arith.addf %71, %6 : vector<1x32xf32>
    %c34 = arith.constant 34 : index
    %c0_23 = arith.constant 0 : index
    %73 = vector.load %arg4[%c34, %c0_23] : memref<151x32xf32, #tpu.memory_space<vmem>>, vector<1x32xf32>
    %c36_24 = arith.constant 36 : index
    %c1_25 = arith.constant 1 : index
    %74 = vector.load %arg4[%c36_24, %c1_25] : memref<151x32xf32, #tpu.memory_space<vmem>>, vector<1x1xf32>
    %75 = arith.addf %55, %29 : vector<1x32xf32>
    %76 = math.tanh %75 : vector<1x32xf32>
    %77 = arith.mulf %76, %73 : vector<1x32xf32>
    %cst_26 = arith.constant dense<0.000000e+00> : vector<1xf32>
    %78 = vector.multi_reduction <add>, %77, %cst_26 [1] : vector<1x32xf32> to vector<1xf32>
    %79 = vector.shape_cast %78 : vector<1xf32> to vector<1x1xf32>
    %80 = arith.addf %55, %72 : vector<1x32xf32>
    %81 = math.tanh %80 : vector<1x32xf32>
    %82 = arith.mulf %81, %73 : vector<1x32xf32>
    %cst_27 = arith.constant dense<0.000000e+00> : vector<1xf32>
    %83 = vector.multi_reduction <add>, %82, %cst_27 [1] : vector<1x32xf32> to vector<1xf32>
    %84 = vector.shape_cast %83 : vector<1xf32> to vector<1x1xf32>
    %85 = tpu.concatenate %79, %84 in 1 : vector<1x1xf32>, vector<1x1xf32> -> vector<1x2xf32>
    %86 = vector.broadcast %74 : vector<1x1xf32> to vector<1x2xf32>
    %87 = arith.addf %85, %86 : vector<1x2xf32>
    %c1_28 = arith.constant 1 : index
    %c0_29 = arith.constant 0 : index
    %88 = vector.load %arg0[%c1_28, %c0_29] : memref<6x32xf32, #tpu.memory_space<vmem>>, vector<1x2xf32>
    %89 = arith.addf %87, %88 : vector<1x2xf32>
    %90 = tpu.iota {dimensions = array<i32: 1>} : vector<1x2xi32>
    %cst_30 = arith.constant dense<0xFF800000> : vector<1xf32>
    %91 = vector.multi_reduction <maximumf>, %89, %cst_30 [1] : vector<1x2xf32> to vector<1xf32>
    %92 = vector.shape_cast %91 : vector<1xf32> to vector<1x1xf32>
    %93 = vector.broadcast %92 : vector<1x1xf32> to vector<1x2xf32>
    %94 = arith.cmpf oge, %89, %93 : vector<1x2xf32>
    %c2_i32 = arith.constant 2 : i32
    %95 = vector.broadcast %c2_i32 : i32 to vector<1x2xi32>
    %96 = arith.select %94, %90, %95 : vector<1x2xi1>, vector<1x2xi32>
    %cst_31 = arith.constant dense<2147483647> : vector<1xi32>
    %97 = vector.multi_reduction <minsi>, %96, %cst_31 [1] : vector<1x2xi32> to vector<1xi32>
    %98 = vector.shape_cast %97 : vector<1xi32> to vector<1x1xi32>
    %cst_32 = arith.constant 0.000000e+00 : f32
    %99 = vector.broadcast %cst_32 : f32 to vector<1x30xf32>
    %100 = tpu.concatenate %87, %99 in 1 : vector<1x2xf32>, vector<1x30xf32> -> vector<1x32xf32>
    %101 = tpu.concatenate %70, %70 in 1 : vector<1x32xf32>, vector<1x32xf32> -> vector<1x64xf32>
    %102 = arith.truncf %101 : vector<1x64xf32> to vector<1x64xbf16>
    %cst_33 = arith.constant dense<0.000000e+00> : vector<1x160xf32>
    %103 = tpu.matmul %102, %3, %cst_33 {dimension_numbers = #tpu.dot_dimension_numbers<[1], [0], [0], [1], [0, 0, 1, 1], [], []>} : vector<1x64xbf16>, vector<64x160xbf16>, vector<1x160xf32> -> vector<1x160xf32>
    %104 = arith.addf %103, %4 : vector<1x160xf32>
    %105 = vector.extract_strided_slice %104 {offsets = [0, 0], sizes = [1, 128], strides = [1, 1]} : vector<1x160xf32> to vector<1x128xf32>
    %106 = vector.extract_strided_slice %104 {offsets = [0, 128], sizes = [1, 32], strides = [1, 1]} : vector<1x160xf32> to vector<1x32xf32>
    %107 = arith.negf %105 : vector<1x128xf32>
    %108 = math.exp %107 : vector<1x128xf32>
    %cst_34 = arith.constant 1.000000e+00 : f32
    %109 = vector.broadcast %cst_34 : f32 to vector<1x128xf32>
    %110 = arith.addf %109, %108 : vector<1x128xf32>
    %111 = arith.divf %109, %110 : vector<1x128xf32>
    %112 = math.tanh %105 : vector<1x128xf32>
    %113 = vector.extract_strided_slice %111 {offsets = [0, 0], sizes = [1, 32], strides = [1, 1]} : vector<1x128xf32> to vector<1x32xf32>
    %114 = vector.extract_strided_slice %111 {offsets = [0, 32], sizes = [1, 32], strides = [1, 1]} : vector<1x128xf32> to vector<1x32xf32>
    %115 = vector.extract_strided_slice %112 {offsets = [0, 64], sizes = [1, 32], strides = [1, 1]} : vector<1x128xf32> to vector<1x32xf32>
    %116 = vector.extract_strided_slice %111 {offsets = [0, 96], sizes = [1, 32], strides = [1, 1]} : vector<1x128xf32> to vector<1x32xf32>
    %117 = arith.mulf %114, %68 : vector<1x32xf32>
    %118 = arith.mulf %113, %115 : vector<1x32xf32>
    %119 = arith.addf %117, %118 : vector<1x32xf32>
    %120 = math.tanh %119 : vector<1x32xf32>
    %121 = arith.mulf %116, %120 : vector<1x32xf32>
    %cst_35 = arith.constant dense<0.000000e+00> : vector<1x32xf32>
    %122 = tpu.matmul %119, %5, %cst_35 {dimension_numbers = #tpu.dot_dimension_numbers<[1], [0], [0], [1], [0, 0, 1, 1], [], []>} : vector<1x32xf32>, vector<32x32xf32>, vector<1x32xf32> -> vector<1x32xf32>
    %123 = arith.addf %122, %6 : vector<1x32xf32>
    %c35 = arith.constant 35 : index
    %c0_36 = arith.constant 0 : index
    %124 = vector.load %arg4[%c35, %c0_36] : memref<151x32xf32, #tpu.memory_space<vmem>>, vector<1x32xf32>
    %c36_37 = arith.constant 36 : index
    %c2_38 = arith.constant 2 : index
    %125 = vector.load %arg4[%c36_37, %c2_38] : memref<151x32xf32, #tpu.memory_space<vmem>>, vector<1x1xf32>
    %126 = arith.addf %106, %29 : vector<1x32xf32>
    %127 = math.tanh %126 : vector<1x32xf32>
    %128 = arith.mulf %127, %124 : vector<1x32xf32>
    %cst_39 = arith.constant dense<0.000000e+00> : vector<1xf32>
    %129 = vector.multi_reduction <add>, %128, %cst_39 [1] : vector<1x32xf32> to vector<1xf32>
    %130 = vector.shape_cast %129 : vector<1xf32> to vector<1x1xf32>
    %131 = arith.addf %106, %72 : vector<1x32xf32>
    %132 = math.tanh %131 : vector<1x32xf32>
    %133 = arith.mulf %132, %124 : vector<1x32xf32>
    %cst_40 = arith.constant dense<0.000000e+00> : vector<1xf32>
    %134 = vector.multi_reduction <add>, %133, %cst_40 [1] : vector<1x32xf32> to vector<1xf32>
    %135 = vector.shape_cast %134 : vector<1xf32> to vector<1x1xf32>
    %136 = arith.addf %106, %123 : vector<1x32xf32>
    %137 = math.tanh %136 : vector<1x32xf32>
    %138 = arith.mulf %137, %124 : vector<1x32xf32>
    %cst_41 = arith.constant dense<0.000000e+00> : vector<1xf32>
    %139 = vector.multi_reduction <add>, %138, %cst_41 [1] : vector<1x32xf32> to vector<1xf32>
    %140 = vector.shape_cast %139 : vector<1xf32> to vector<1x1xf32>
    %141 = tpu.concatenate %130, %135, %140 in 1 : vector<1x1xf32>, vector<1x1xf32>, vector<1x1xf32> -> vector<1x3xf32>
    %142 = vector.broadcast %125 : vector<1x1xf32> to vector<1x3xf32>
    %143 = arith.addf %141, %142 : vector<1x3xf32>
    %c2_42 = arith.constant 2 : index
    %c0_43 = arith.constant 0 : index
    %144 = vector.load %arg0[%c2_42, %c0_43] : memref<6x32xf32, #tpu.memory_space<vmem>>, vector<1x3xf32>
    %145 = arith.addf %143, %144 : vector<1x3xf32>
    %146 = tpu.iota {dimensions = array<i32: 1>} : vector<1x3xi32>
    %cst_44 = arith.constant dense<0xFF800000> : vector<1xf32>
    %147 = vector.multi_reduction <maximumf>, %145, %cst_44 [1] : vector<1x3xf32> to vector<1xf32>
    %148 = vector.shape_cast %147 : vector<1xf32> to vector<1x1xf32>
    %149 = vector.broadcast %148 : vector<1x1xf32> to vector<1x3xf32>
    %150 = arith.cmpf oge, %145, %149 : vector<1x3xf32>
    %c3_i32 = arith.constant 3 : i32
    %151 = vector.broadcast %c3_i32 : i32 to vector<1x3xi32>
    %152 = arith.select %150, %146, %151 : vector<1x3xi1>, vector<1x3xi32>
    %cst_45 = arith.constant dense<2147483647> : vector<1xi32>
    %153 = vector.multi_reduction <minsi>, %152, %cst_45 [1] : vector<1x3xi32> to vector<1xi32>
    %154 = vector.shape_cast %153 : vector<1xi32> to vector<1x1xi32>
    %cst_46 = arith.constant 0.000000e+00 : f32
    %155 = vector.broadcast %cst_46 : f32 to vector<1x29xf32>
    %156 = tpu.concatenate %143, %155 in 1 : vector<1x3xf32>, vector<1x29xf32> -> vector<1x32xf32>
    %157 = tpu.concatenate %121, %121 in 1 : vector<1x32xf32>, vector<1x32xf32> -> vector<1x64xf32>
    %158 = arith.truncf %157 : vector<1x64xf32> to vector<1x64xbf16>
    %cst_47 = arith.constant dense<0.000000e+00> : vector<1x160xf32>
    %159 = tpu.matmul %158, %3, %cst_47 {dimension_numbers = #tpu.dot_dimension_numbers<[1], [0], [0], [1], [0, 0, 1, 1], [], []>} : vector<1x64xbf16>, vector<64x160xbf16>, vector<1x160xf32> -> vector<1x160xf32>
    %160 = arith.addf %159, %4 : vector<1x160xf32>
    %161 = vector.extract_strided_slice %160 {offsets = [0, 0], sizes = [1, 128], strides = [1, 1]} : vector<1x160xf32> to vector<1x128xf32>
    %162 = arith.negf %161 : vector<1x128xf32>
    %163 = math.exp %162 : vector<1x128xf32>
    %cst_48 = arith.constant 1.000000e+00 : f32
    %164 = vector.broadcast %cst_48 : f32 to vector<1x128xf32>
    %165 = arith.addf %164, %163 : vector<1x128xf32>
    %166 = arith.divf %164, %165 : vector<1x128xf32>
    %167 = math.tanh %161 : vector<1x128xf32>
    %168 = vector.extract_strided_slice %166 {offsets = [0, 0], sizes = [1, 32], strides = [1, 1]} : vector<1x128xf32> to vector<1x32xf32>
    %169 = vector.extract_strided_slice %166 {offsets = [0, 32], sizes = [1, 32], strides = [1, 1]} : vector<1x128xf32> to vector<1x32xf32>
    %170 = vector.extract_strided_slice %167 {offsets = [0, 64], sizes = [1, 32], strides = [1, 1]} : vector<1x128xf32> to vector<1x32xf32>
    %171 = vector.extract_strided_slice %166 {offsets = [0, 96], sizes = [1, 32], strides = [1, 1]} : vector<1x128xf32> to vector<1x32xf32>
    %172 = arith.mulf %169, %119 : vector<1x32xf32>
    %173 = arith.mulf %168, %170 : vector<1x32xf32>
    %174 = arith.addf %172, %173 : vector<1x32xf32>
    %175 = math.tanh %174 : vector<1x32xf32>
    %176 = arith.mulf %171, %175 : vector<1x32xf32>
    %c37 = arith.constant 37 : index
    %c0_49 = arith.constant 0 : index
    %177 = vector.load %arg4[%c37, %c0_49] : memref<151x32xf32, #tpu.memory_space<vmem>>, vector<32x5xf32>
    %c133 = arith.constant 133 : index
    %c0_50 = arith.constant 0 : index
    %178 = vector.load %arg4[%c133, %c0_50] : memref<151x32xf32, #tpu.memory_space<vmem>>, vector<1x5xf32>
    %cst_51 = arith.constant dense<0.000000e+00> : vector<1x5xf32>
    %179 = tpu.matmul %174, %177, %cst_51 {dimension_numbers = #tpu.dot_dimension_numbers<[1], [0], [0], [1], [0, 0, 1, 1], [], []>} : vector<1x32xf32>, vector<32x5xf32>, vector<1x5xf32> -> vector<1x5xf32>
    %180 = arith.addf %179, %178 : vector<1x5xf32>
    %c3 = arith.constant 3 : index
    %c0_52 = arith.constant 0 : index
    %181 = vector.load %arg0[%c3, %c0_52] : memref<6x32xf32, #tpu.memory_space<vmem>>, vector<1x5xf32>
    %182 = arith.addf %180, %181 : vector<1x5xf32>
    %183 = tpu.iota {dimensions = array<i32: 1>} : vector<1x5xi32>
    %cst_53 = arith.constant dense<0xFF800000> : vector<1xf32>
    %184 = vector.multi_reduction <maximumf>, %182, %cst_53 [1] : vector<1x5xf32> to vector<1xf32>
    %185 = vector.shape_cast %184 : vector<1xf32> to vector<1x1xf32>
    %186 = vector.broadcast %185 : vector<1x1xf32> to vector<1x5xf32>
    %187 = arith.cmpf oge, %182, %186 : vector<1x5xf32>
    %c5_i32 = arith.constant 5 : i32
    %188 = vector.broadcast %c5_i32 : i32 to vector<1x5xi32>
    %189 = arith.select %187, %183, %188 : vector<1x5xi1>, vector<1x5xi32>
    %cst_54 = arith.constant dense<2147483647> : vector<1xi32>
    %190 = vector.multi_reduction <minsi>, %189, %cst_54 [1] : vector<1x5xi32> to vector<1xi32>
    %191 = vector.shape_cast %190 : vector<1xi32> to vector<1x1xi32>
    %cst_55 = arith.constant 0.000000e+00 : f32
    %192 = vector.broadcast %cst_55 : f32 to vector<1x27xf32>
    %193 = tpu.concatenate %180, %192 in 1 : vector<1x5xf32>, vector<1x27xf32> -> vector<1x32xf32>
    %c136 = arith.constant 136 : index
    %c0_56 = arith.constant 0 : index
    %194 = vector.load %arg4[%c136, %c0_56] : memref<151x32xf32, #tpu.memory_space<vmem>>, vector<5x32xf32>
    %195 = tpu.iota {dimensions = array<i32: 0>} : vector<5x1xi32>
    %196 = vector.broadcast %191 : vector<1x1xi32> to vector<5x1xi32>
    %197 = arith.cmpi eq, %195, %196 : vector<5x1xi32>
    %cst_57 = arith.constant 0.000000e+00 : f32
    %198 = vector.shape_cast %197 : vector<5x1xi1> to vector<5x1xi1>
    %199 = vector.broadcast %198 : vector<5x1xi1> to vector<5x32xi1>
    %200 = vector.broadcast %cst_57 : f32 to vector<5x32xf32>
    %201 = arith.select %199, %194, %200 : vector<5x32xi1>, vector<5x32xf32>
    %cst_58 = arith.constant dense<0.000000e+00> : vector<32xf32>
    %202 = vector.multi_reduction <add>, %201, %cst_58 [0] : vector<5x32xf32> to vector<32xf32>
    %203 = vector.shape_cast %202 : vector<32xf32> to vector<1x32xf32>
    %204 = tpu.concatenate %203, %176 in 1 : vector<1x32xf32>, vector<1x32xf32> -> vector<1x64xf32>
    %205 = arith.truncf %204 : vector<1x64xf32> to vector<1x64xbf16>
    %cst_59 = arith.constant dense<0.000000e+00> : vector<1x160xf32>
    %206 = tpu.matmul %205, %3, %cst_59 {dimension_numbers = #tpu.dot_dimension_numbers<[1], [0], [0], [1], [0, 0, 1, 1], [], []>} : vector<1x64xbf16>, vector<64x160xbf16>, vector<1x160xf32> -> vector<1x160xf32>
    %207 = arith.addf %206, %4 : vector<1x160xf32>
    %208 = vector.extract_strided_slice %207 {offsets = [0, 0], sizes = [1, 128], strides = [1, 1]} : vector<1x160xf32> to vector<1x128xf32>
    %209 = arith.negf %208 : vector<1x128xf32>
    %210 = math.exp %209 : vector<1x128xf32>
    %cst_60 = arith.constant 1.000000e+00 : f32
    %211 = vector.broadcast %cst_60 : f32 to vector<1x128xf32>
    %212 = arith.addf %211, %210 : vector<1x128xf32>
    %213 = arith.divf %211, %212 : vector<1x128xf32>
    %214 = math.tanh %208 : vector<1x128xf32>
    %215 = vector.extract_strided_slice %213 {offsets = [0, 0], sizes = [1, 32], strides = [1, 1]} : vector<1x128xf32> to vector<1x32xf32>
    %216 = vector.extract_strided_slice %213 {offsets = [0, 32], sizes = [1, 32], strides = [1, 1]} : vector<1x128xf32> to vector<1x32xf32>
    %217 = vector.extract_strided_slice %214 {offsets = [0, 64], sizes = [1, 32], strides = [1, 1]} : vector<1x128xf32> to vector<1x32xf32>
    %218 = vector.extract_strided_slice %213 {offsets = [0, 96], sizes = [1, 32], strides = [1, 1]} : vector<1x128xf32> to vector<1x32xf32>
    %219 = arith.mulf %216, %174 : vector<1x32xf32>
    %220 = arith.mulf %215, %217 : vector<1x32xf32>
    %221 = arith.addf %219, %220 : vector<1x32xf32>
    %222 = math.tanh %221 : vector<1x32xf32>
    %223 = arith.mulf %218, %222 : vector<1x32xf32>
    %c69 = arith.constant 69 : index
    %c0_61 = arith.constant 0 : index
    %224 = vector.load %arg4[%c69, %c0_61] : memref<151x32xf32, #tpu.memory_space<vmem>>, vector<32x5xf32>
    %c134 = arith.constant 134 : index
    %c0_62 = arith.constant 0 : index
    %225 = vector.load %arg4[%c134, %c0_62] : memref<151x32xf32, #tpu.memory_space<vmem>>, vector<1x5xf32>
    %cst_63 = arith.constant dense<0.000000e+00> : vector<1x5xf32>
    %226 = tpu.matmul %221, %224, %cst_63 {dimension_numbers = #tpu.dot_dimension_numbers<[1], [0], [0], [1], [0, 0, 1, 1], [], []>} : vector<1x32xf32>, vector<32x5xf32>, vector<1x5xf32> -> vector<1x5xf32>
    %227 = arith.addf %226, %225 : vector<1x5xf32>
    %c4 = arith.constant 4 : index
    %c0_64 = arith.constant 0 : index
    %228 = vector.load %arg0[%c4, %c0_64] : memref<6x32xf32, #tpu.memory_space<vmem>>, vector<1x5xf32>
    %229 = arith.addf %227, %228 : vector<1x5xf32>
    %230 = tpu.iota {dimensions = array<i32: 1>} : vector<1x5xi32>
    %cst_65 = arith.constant dense<0xFF800000> : vector<1xf32>
    %231 = vector.multi_reduction <maximumf>, %229, %cst_65 [1] : vector<1x5xf32> to vector<1xf32>
    %232 = vector.shape_cast %231 : vector<1xf32> to vector<1x1xf32>
    %233 = vector.broadcast %232 : vector<1x1xf32> to vector<1x5xf32>
    %234 = arith.cmpf oge, %229, %233 : vector<1x5xf32>
    %c5_i32_66 = arith.constant 5 : i32
    %235 = vector.broadcast %c5_i32_66 : i32 to vector<1x5xi32>
    %236 = arith.select %234, %230, %235 : vector<1x5xi1>, vector<1x5xi32>
    %cst_67 = arith.constant dense<2147483647> : vector<1xi32>
    %237 = vector.multi_reduction <minsi>, %236, %cst_67 [1] : vector<1x5xi32> to vector<1xi32>
    %238 = vector.shape_cast %237 : vector<1xi32> to vector<1x1xi32>
    %cst_68 = arith.constant 0.000000e+00 : f32
    %239 = vector.broadcast %cst_68 : f32 to vector<1x27xf32>
    %240 = tpu.concatenate %227, %239 in 1 : vector<1x5xf32>, vector<1x27xf32> -> vector<1x32xf32>
    %c141 = arith.constant 141 : index
    %c0_69 = arith.constant 0 : index
    %241 = vector.load %arg4[%c141, %c0_69] : memref<151x32xf32, #tpu.memory_space<vmem>>, vector<5x32xf32>
    %242 = tpu.iota {dimensions = array<i32: 0>} : vector<5x1xi32>
    %243 = vector.broadcast %238 : vector<1x1xi32> to vector<5x1xi32>
    %244 = arith.cmpi eq, %242, %243 : vector<5x1xi32>
    %cst_70 = arith.constant 0.000000e+00 : f32
    %245 = vector.shape_cast %244 : vector<5x1xi1> to vector<5x1xi1>
    %246 = vector.broadcast %245 : vector<5x1xi1> to vector<5x32xi1>
    %247 = vector.broadcast %cst_70 : f32 to vector<5x32xf32>
    %248 = arith.select %246, %241, %247 : vector<5x32xi1>, vector<5x32xf32>
    %cst_71 = arith.constant dense<0.000000e+00> : vector<32xf32>
    %249 = vector.multi_reduction <add>, %248, %cst_71 [0] : vector<5x32xf32> to vector<32xf32>
    %250 = vector.shape_cast %249 : vector<32xf32> to vector<1x32xf32>
    %251 = tpu.concatenate %250, %223 in 1 : vector<1x32xf32>, vector<1x32xf32> -> vector<1x64xf32>
    %252 = arith.truncf %251 : vector<1x64xf32> to vector<1x64xbf16>
    %cst_72 = arith.constant dense<0.000000e+00> : vector<1x160xf32>
    %253 = tpu.matmul %252, %3, %cst_72 {dimension_numbers = #tpu.dot_dimension_numbers<[1], [0], [0], [1], [0, 0, 1, 1], [], []>} : vector<1x64xbf16>, vector<64x160xbf16>, vector<1x160xf32> -> vector<1x160xf32>
    %254 = arith.addf %253, %4 : vector<1x160xf32>
    %255 = vector.extract_strided_slice %254 {offsets = [0, 0], sizes = [1, 128], strides = [1, 1]} : vector<1x160xf32> to vector<1x128xf32>
    %256 = arith.negf %255 : vector<1x128xf32>
    %257 = math.exp %256 : vector<1x128xf32>
    %cst_73 = arith.constant 1.000000e+00 : f32
    %258 = vector.broadcast %cst_73 : f32 to vector<1x128xf32>
    %259 = arith.addf %258, %257 : vector<1x128xf32>
    %260 = arith.divf %258, %259 : vector<1x128xf32>
    %261 = math.tanh %255 : vector<1x128xf32>
    %262 = vector.extract_strided_slice %260 {offsets = [0, 0], sizes = [1, 32], strides = [1, 1]} : vector<1x128xf32> to vector<1x32xf32>
    %263 = vector.extract_strided_slice %260 {offsets = [0, 32], sizes = [1, 32], strides = [1, 1]} : vector<1x128xf32> to vector<1x32xf32>
    %264 = vector.extract_strided_slice %261 {offsets = [0, 64], sizes = [1, 32], strides = [1, 1]} : vector<1x128xf32> to vector<1x32xf32>
    %265 = vector.extract_strided_slice %260 {offsets = [0, 96], sizes = [1, 32], strides = [1, 1]} : vector<1x128xf32> to vector<1x32xf32>
    %266 = arith.mulf %263, %221 : vector<1x32xf32>
    %267 = arith.mulf %262, %264 : vector<1x32xf32>
    %268 = arith.addf %266, %267 : vector<1x32xf32>
    %269 = math.tanh %268 : vector<1x32xf32>
    %270 = arith.mulf %265, %269 : vector<1x32xf32>
    %c101 = arith.constant 101 : index
    %c0_74 = arith.constant 0 : index
    %271 = vector.load %arg4[%c101, %c0_74] : memref<151x32xf32, #tpu.memory_space<vmem>>, vector<32x5xf32>
    %c135 = arith.constant 135 : index
    %c0_75 = arith.constant 0 : index
    %272 = vector.load %arg4[%c135, %c0_75] : memref<151x32xf32, #tpu.memory_space<vmem>>, vector<1x5xf32>
    %cst_76 = arith.constant dense<0.000000e+00> : vector<1x5xf32>
    %273 = tpu.matmul %268, %271, %cst_76 {dimension_numbers = #tpu.dot_dimension_numbers<[1], [0], [0], [1], [0, 0, 1, 1], [], []>} : vector<1x32xf32>, vector<32x5xf32>, vector<1x5xf32> -> vector<1x5xf32>
    %274 = arith.addf %273, %272 : vector<1x5xf32>
    %c5 = arith.constant 5 : index
    %c0_77 = arith.constant 0 : index
    %275 = vector.load %arg0[%c5, %c0_77] : memref<6x32xf32, #tpu.memory_space<vmem>>, vector<1x5xf32>
    %276 = arith.addf %274, %275 : vector<1x5xf32>
    %277 = tpu.iota {dimensions = array<i32: 1>} : vector<1x5xi32>
    %cst_78 = arith.constant dense<0xFF800000> : vector<1xf32>
    %278 = vector.multi_reduction <maximumf>, %276, %cst_78 [1] : vector<1x5xf32> to vector<1xf32>
    %279 = vector.shape_cast %278 : vector<1xf32> to vector<1x1xf32>
    %280 = vector.broadcast %279 : vector<1x1xf32> to vector<1x5xf32>
    %281 = arith.cmpf oge, %276, %280 : vector<1x5xf32>
    %c5_i32_79 = arith.constant 5 : i32
    %282 = vector.broadcast %c5_i32_79 : i32 to vector<1x5xi32>
    %283 = arith.select %281, %277, %282 : vector<1x5xi1>, vector<1x5xi32>
    %cst_80 = arith.constant dense<2147483647> : vector<1xi32>
    %284 = vector.multi_reduction <minsi>, %283, %cst_80 [1] : vector<1x5xi32> to vector<1xi32>
    %285 = vector.shape_cast %284 : vector<1xi32> to vector<1x1xi32>
    %cst_81 = arith.constant 0.000000e+00 : f32
    %286 = vector.broadcast %cst_81 : f32 to vector<1x27xf32>
    %287 = tpu.concatenate %274, %286 in 1 : vector<1x5xf32>, vector<1x27xf32> -> vector<1x32xf32>
    %288 = tpu.concatenate %270, %270, %268, %29, %72, %123, %49, %100, %156, %193, %240, %287 in 0 : vector<1x32xf32>, vector<1x32xf32>, vector<1x32xf32>, vector<1x32xf32>, vector<1x32xf32>, vector<1x32xf32>, vector<1x32xf32>, vector<1x32xf32>, vector<1x32xf32>, vector<1x32xf32>, vector<1x32xf32>, vector<1x32xf32> -> vector<12x32xf32>
    %c0_82 = arith.constant 0 : index
    %c0_83 = arith.constant 0 : index
    %289 = vector.load %arg5[%c0_82, %c0_83] : memref<12x32xf32, #tpu.memory_space<vmem>>, vector<12x32xf32>
    tpu.vector_store %arg5[%c0_82, %c0_83], %288 {strides = array<i32>} : memref<12x32xf32, #tpu.memory_space<vmem>>, vector<12x32xf32>,
    %290 = tpu.concatenate %47, %98, %154, %191, %238, %285 in 1 : vector<1x1xi32>, vector<1x1xi32>, vector<1x1xi32>, vector<1x1xi32>, vector<1x1xi32>, vector<1x1xi32> -> vector<1x6xi32>
    %c0_84 = arith.constant 0 : index
    %c0_85 = arith.constant 0 : index
    %291 = vector.load %arg6[%c0_84, %c0_85] : memref<1x6xi32, #tpu.memory_space<vmem>>, vector<1x6xi32>
    tpu.vector_store %arg6[%c0_84, %c0_85], %290 {strides = array<i32>} : memref<1x6xi32, #tpu.memory_space<vmem>>, vector<1x6xi32>,
    return
  }
}

</mosaic_0001>

<llo_original>
// kernel: _forward.1
$region0: #{_forward.1}
  #allocation0 [shape = 'u32[]', space=smem, size = 0x4, offset = 0x4, fixed_abs, tag = 'smem constant byte address 0x4 - core index']
  #allocation1 [shape = 'u32[72,128]{1,0:T(1,128)}', space=vmem, size = 0x9000, scoped, tag = 'internal scratch']
  %s0 = inlined_call_operand.vmem [shape: f32[6,32], index: 0, kind: input, shape index: {}]
  %s1 = inlined_call_operand.vmem [shape: f32[3,32], index: 1, kind: input, shape index: {}]
  %s2 = inlined_call_operand.vmem [shape: bf16[64,160], index: 2, kind: input, shape index: {}]
  %s3 = inlined_call_operand.vmem [shape: f32[1,160], index: 3, kind: input, shape index: {}]
  %s4 = inlined_call_operand.vmem [shape: f32[151,32], index: 4, kind: input, shape index: {}]
  %s5 = inlined_call_operand.vmem [shape: f32[12,32], index: 5, kind: output, shape index: {0}]
  %s6 = inlined_call_operand.vmem [shape: s32[1,6], index: 6, kind: output, shape index: {1}]
  %7 = xla_tuple %s5, %s6
  %s8 = sld [smem:[#allocation0]]
  $region38: #{_forward.1} parent=0
    _
  %s10 = ssub.s32 1, %s8
  %s11 = scalar_select 0, %s10, %s8
  // Predicated region
  $region2: #{_forward.1} parent=0 // pred_check
    _
  $region3: #{_forward.1} parent=0 // pred_check_branch
    %13 = sbr.rel (0) target = $region5
  $region4: #{_forward.1} parent=0 // pred_region
    _
  $region5: #{_forward.1} parent=0 // pred_fallthru
    _
  // Predicated region
  $region6: #{_forward.1} parent=0 // pred_check
    _
  $region7: #{_forward.1} parent=0 // pred_check_branch
    %15 = sbr.rel (0) target = $region9
  $region8: #{_forward.1} parent=0 // pred_region
    _
  $region9: #{_forward.1} parent=0 // pred_fallthru
    _
  // Predicated region
  $region10: #{_forward.1} parent=0 // pred_check
    _
  $region11: #{_forward.1} parent=0 // pred_check_branch
    %17 = sbr.rel (0) target = $region13
  $region12: #{_forward.1} parent=0 // pred_region
    _
  $region13: #{_forward.1} parent=0 // pred_fallthru
    _
  // Predicated region
  $region14: #{_forward.1} parent=0 // pred_check
    _
  $region15: #{_forward.1} parent=0 // pred_check_branch
    %19 = sbr.rel (0) target = $region17
  $region16: #{_forward.1} parent=0 // pred_region
    _
  $region17: #{_forward.1} parent=0 // pred_fallthru
    _
  // Predicated region
  $region18: #{_forward.1} parent=0 // pred_check
    _
  $region19: #{_forward.1} parent=0 // pred_check_branch
    %21 = sbr.rel (0) target = $region21
  $region20: #{_forward.1} parent=0 // pred_region
    _
  $region21: #{_forward.1} parent=0 // pred_fallthru
    _
  %v23 = vld [vmem:[%s1] sm:$0x1]
  %v24 = vld [vmem:[%s1 + $0x1] sm:$0x1]
  %v25 = vld [vmem:[%s1 + $0x2] sm:$0x1]
  %v26 = vld [vmem:[%s2] sm:$0xff]
  %v27 = vld [vmem:[%s2 + $0x8] sm:$0xff]
  %v28 = vld [vmem:[%s2 + $0x10] sm:$0xff]
  %v29 = vld [vmem:[%s2 + $0x18] sm:$0xff]
  %v30 = vld [vmem:[%s2 + $0x20] sm:$0xff]
  %v31 = vld [vmem:[%s2 + $0x28] sm:$0xff]
  %v32 = vld [vmem:[%s2 + $0x30] sm:$0xff]
  %v33 = vld [vmem:[%s2 + $0x38] sm:$0xff]
  %v34 = vld [vmem:[%s3] sm:$0x3]
  %v35 = vld [vmem:[%s4] sm:$0xff]
  %v36 = vld [vmem:[%s4 + $0x8] sm:$0xff]
  %v37 = vld [vmem:[%s4 + $0x10] sm:$0xff]
  %v38 = vld [vmem:[%s4 + $0x18] sm:$0xff]
  %v39 = vld [vmem:[%s4 + $0x20] sm:$0x1]
  %41 = vrot.lane.b32.xlu0 %v24, 32
  %v42 = vpop.permute.xlu0 %41
  %vm44 = vcmask 261120
  %v45 = vsel %vm44, %v23, %v42
  %v46 = vpack.c.bf16 %v45, %v45
  %v55 = vunpack.c.l.b16 %v26
  %v56 = vunpack.c.h.b16 %v26
  %v57 = vunpack.c.l.b16 %v27
  %v58 = vunpack.c.h.b16 %v27
  %v59 = vunpack.c.l.b16 %v28
  %v60 = vunpack.c.h.b16 %v28
  %v61 = vunpack.c.l.b16 %v29
  %v62 = vunpack.c.h.b16 %v29
  %v63 = vunpack.c.l.b16 %v30
  %v64 = vunpack.c.h.b16 %v30
  %v65 = vunpack.c.l.b16 %v31
  %v66 = vunpack.c.h.b16 %v31
  %v67 = vunpack.c.l.b16 %v32
  %v68 = vunpack.c.h.b16 %v32
  %v69 = vunpack.c.l.b16 %v33
  %v70 = vunpack.c.h.b16 %v33
  %v71 = vpack.c.b16 %v57, %v55
  %v72 = vpack.c.b16 %v58, %v56
  %v73 = vpack.c.b16 %v61, %v59
  %v74 = vpack.c.b16 %v62, %v60
  %v75 = vpack.c.b16 %v65, %v63
  %v76 = vpack.c.b16 %v66, %v64
  %v77 = vpack.c.b16 %v69, %v67
  %v78 = vpack.c.b16 %v70, %v68
  %v88 = vperm.slane %v34, 0
  %v89 = vperm.slane %v34, 1
  %vm92 = vcmask 523264
  %v94 = vsel %vm92, %v46, 0
  %96 = vmatpush.bf16.msra.mxu0 0
  %97 = vmatpush.bf16.msra.mxu0 0
  %98 = vmatpush.bf16.msra.mxu0 0
  %99 = vmatpush.bf16.msra.mxu0 0
  %100 = vmatpush.bf16.msra.mxu0 %v77
  %101 = vmatpush.bf16.msra.mxu0 %v75
  %102 = vmatpush.bf16.msra.mxu0 %v73
  %103 = vmatpush.bf16.msra.mxu0 %v71
  %104 = vmatmul.bf16.gmra.mxu0 %v94
  %v105 = vpop.f32.mrf.mxu0
  %v106 = vadd.f32 %v88, %v105
  %v107 = vpop.f32.mrf.mxu0
  %108 = vdwg.mxu0
  %109 = vmatpush.bf16.msra.mxu0 0
  %110 = vmatpush.bf16.msra.mxu0 0
  %111 = vmatpush.bf16.msra.mxu0 0
  %112 = vmatpush.bf16.msra.mxu0 0
  %113 = vmatpush.bf16.msra.mxu0 %v78
  %114 = vmatpush.bf16.msra.mxu0 %v76
  %115 = vmatpush.bf16.msra.mxu0 %v74
  %116 = vmatpush.bf16.msra.mxu0 %v72
  %117 = vmatmul.bf16.gmra.mxu0 %v94
  %v118 = vpop.f32.mrf.mxu0
  %v119 = vadd.f32 %v89, %v118
  %v120 = vpop.f32.mrf.mxu0
  %121 = vdwg.mxu0
  %v122 = vxor.u32 %v106, 2147483648
  %v123 = vmul.f32 %v122, 1.442695
  %v124 = vpow.pop %v123
  %v125 = vadd.f32 %v124, 1.0
  %v126 = vrcp.pop %v125
  %v127 = vmul.f32 %v125, %v126
  %v128 = vsub.f32 1.0, %v127
  %v129 = vmul.f32 %v126, %v128
  %v130 = vadd.f32 %v126, %v129
  %vm131 = vweird.f32 %v125
  %vm132 = vweird.f32 %v126
  %vm133 = vmor %vm131, %vm132
  %v134 = vsel %vm133, %v126, %v130
  %v135 = vand.u32 2147483647, %v125
  %vm136 = vcmp.eq.f32.partialorder %v135, 8.507059e+37
  %v137 = vand.u32 %v125, 2147483648
  %v138 = vor.u32 1.1754944e-38, %v137
  %v139 = vsel %vm136, %v138, %v134
  %v140 = vmul.f32 1.0, %v139
  %v141 = vtanh.pop %v106
  %143 = vrot.lane.b32.xlu0 %v25, 32
  %v144 = vpop.permute.xlu0 %143
  %v146 = vmul.f32 %v140, %v144
  %148 = vrot.lane.b32.xlu0 %v141, 64
  %v149 = vpop.permute.xlu0 %148
  %v151 = vmul.f32 %v140, %v149
  %153 = vrot.lane.b32.xlu0 %v151, 32
  %v154 = vpop.permute.xlu0 %153
  %v156 = vadd.f32 %v146, %v154
  %v157 = vtanh.pop %v156
  %159 = vrot.lane.b32.xlu0 %v157, 64
  %v160 = vpop.permute.xlu0 %159
  %v162 = vmul.f32 %v140, %v160
  %164 = vrot.lane.b32.xlu0 %v156, 96
  %v165 = vpop.permute.xlu0 %164
  %v166 = vsel %vm44, %v165, 0
  %168 = vmatpush.msra.mxu0 0.0
  %169 = vmatpush.msra.mxu0 0.0
  %170 = vmatpush.msra.mxu0 0.0
  %171 = vmatpush.msra.mxu0 0.0
  %172 = vmatpush.msra.mxu0 0.0
  %173 = vmatpush.msra.mxu0 0.0
  %174 = vmatpush.msra.mxu0 0.0
  %175 = vmatpush.msra.mxu0 0.0
  %176 = vmatpush.msra.mxu0 0.0
  %177 = vmatpush.msra.mxu0 0.0
  %178 = vmatpush.msra.mxu0 0.0
  %179 = vmatpush.msra.mxu0 0.0
  %180 = vmatpush.msra.mxu0 %v38
  %181 = vmatpush.msra.mxu0 %v37
  %182 = vmatpush.msra.mxu0 %v36
  %183 = vmatpush.msra.mxu0 %v35
  %184 = vmatmul.f32.gmra.mxu0 %v166
  %v185 = vpop.f32.mrf.mxu0
  %v186 = vadd.f32 %v39, %v185
  %187 = vdwg.mxu0
  %v188 = vld [vmem:[%s4 + $0x21] sm:$0x1]
  %v189 = vld [vmem:[%s4 + $0x24] sm:$0x1]
  %v190 = vadd.f32 %v119, %v186
  %v191 = vtanh.pop %v190
  %v192 = vmul.f32 %v191, %v188
  %vm193 = vcmask 253952
  %v194 = vsel %vm193, %v192, 0.0
  %195 = vadd.xlane.f32.xlu0 %v194
  %v196 = vpop.xlane.xlu0 %195
  %v197 = vadd.f32 %v196, %v189
  %v198 = vld [vmem:[%s0] sm:$0x1]
  %v199 = vadd.f32 %v197, %v198
  %v200 = vlaneseq
  %v201 = vand.u32 %v200, 127
  %vm202 = vcmp.ge.f32.partialorder %v199, %v199
  %v203 = vsel %vm202, %v201, 1
  %vm204 = vcmask 7168
  %v205 = vsel %vm204, %v197, 0.0
  %207 = vrot.lane.b32.xlu0 %v162, 32
  %v208 = vpop.permute.xlu0 %207
  %210 = vrot.lane.b32.xlu0 %v162, 64
  %v211 = vpop.permute.xlu0 %210
  %v213 = vsel %vm44, %v208, %v211
  %v214 = vpack.c.bf16 %v213, %v213
  %v216 = vsel %vm92, %v214, 0
  %218 = vmatpush.bf16.msra.mxu0 0
  %219 = vmatpush.bf16.msra.mxu0 0
  %220 = vmatpush.bf16.msra.mxu0 0
  %221 = vmatpush.bf16.msra.mxu0 0
  %222 = vmatpush.bf16.msra.mxu0 %v77
  %223 = vmatpush.bf16.msra.mxu0 %v75
  %224 = vmatpush.bf16.msra.mxu0 %v73
  %225 = vmatpush.bf16.msra.mxu0 %v71
  %226 = vmatmul.bf16.gmra.mxu0 %v216
  %v227 = vpop.f32.mrf.mxu0
  %v228 = vadd.f32 %v88, %v227
  %v229 = vpop.f32.mrf.mxu0
  %230 = vdwg.mxu0
  %231 = vmatpush.bf16.msra.mxu0 0
  %232 = vmatpush.bf16.msra.mxu0 0
  %233 = vmatpush.bf16.msra.mxu0 0
  %234 = vmatpush.bf16.msra.mxu0 0
  %235 = vmatpush.bf16.msra.mxu0 %v78
  %236 = vmatpush.bf16.msra.mxu0 %v76
  %237 = vmatpush.bf16.msra.mxu0 %v74
  %238 = vmatpush.bf16.msra.mxu0 %v72
  %239 = vmatmul.bf16.gmra.mxu0 %v216
  %v240 = vpop.f32.mrf.mxu0
  %v241 = vadd.f32 %v89, %v240
  %v242 = vpop.f32.mrf.mxu0
  %243 = vdwg.mxu0
  %v244 = vxor.u32 %v228, 2147483648
  %v245 = vmul.f32 %v244, 1.442695
  %v246 = vpow.pop %v245
  %v247 = vadd.f32 %v246, 1.0
  %v248 = vrcp.pop %v247
  %v249 = vmul.f32 %v247, %v248
  %v250 = vsub.f32 1.0, %v249
  %v251 = vmul.f32 %v248, %v250
  %v252 = vadd.f32 %v248, %v251
  %vm253 = vweird.f32 %v247
  %vm254 = vweird.f32 %v248
  %vm255 = vmor %vm253, %vm254
  %v256 = vsel %vm255, %v248, %v252
  %v257 = vand.u32 2147483647, %v247
  %vm258 = vcmp.eq.f32.partialorder %v257, 8.507059e+37
  %v259 = vand.u32 %v247, 2147483648
  %v260 = vor.u32 1.1754944e-38, %v259
  %v261 = vsel %vm258, %v260, %v256
  %v262 = vmul.f32 1.0, %v261
  %v263 = vtanh.pop %v228
  %v264 = vmul.f32 %v262, %v156
  %266 = vrot.lane.b32.xlu0 %v263, 64
  %v267 = vpop.permute.xlu0 %266
  %v269 = vmul.f32 %v262, %v267
  %271 = vrot.lane.b32.xlu0 %v269, 32
  %v272 = vpop.permute.xlu0 %271
  %v274 = vadd.f32 %v264, %v272
  %v275 = vtanh.pop %v274
  %277 = vrot.lane.b32.xlu0 %v275, 64
  %v278 = vpop.permute.xlu0 %277
  %v280 = vmul.f32 %v262, %v278
  %282 = vrot.lane.b32.xlu0 %v274, 96
  %v283 = vpop.permute.xlu0 %282
  %v284 = vsel %vm44, %v283, 0
  %286 = vmatpush.msra.mxu0 0.0
  %287 = vmatpush.msra.mxu0 0.0
  %288 = vmatpush.msra.mxu0 0.0
  %289 = vmatpush.msra.mxu0 0.0
  %290 = vmatpush.msra.mxu0 0.0
  %291 = vmatpush.msra.mxu0 0.0
  %292 = vmatpush.msra.mxu0 0.0
  %293 = vmatpush.msra.mxu0 0.0
  %294 = vmatpush.msra.mxu0 0.0
  %295 = vmatpush.msra.mxu0 0.0
  %296 = vmatpush.msra.mxu0 0.0
  %297 = vmatpush.msra.mxu0 0.0
  %298 = vmatpush.msra.mxu0 %v38
  %299 = vmatpush.msra.mxu0 %v37
  %300 = vmatpush.msra.mxu0 %v36
  %301 = vmatpush.msra.mxu0 %v35
  %302 = vmatmul.f32.gmra.mxu0 %v284
  %v303 = vpop.f32.mrf.mxu0
  %v304 = vadd.f32 %v39, %v303
  %305 = vdwg.mxu0
  %v306 = vld [vmem:[%s4 + $0x22] sm:$0x1]
  %v307 = vadd.f32 %v241, %v186
  %v308 = vtanh.pop %v307
  %v309 = vmul.f32 %v308, %v306
  %v310 = vsel %vm193, %v309, 0.0
  %311 = vadd.xlane.f32.xlu0 %v310
  %v312 = vpop.xlane.xlu0 %311
  %v313 = vadd.f32 %v241, %v304
  %v314 = vtanh.pop %v313
  %v315 = vmul.f32 %v314, %v306
  %v316 = vsel %vm193, %v315, 0.0
  %317 = vadd.xlane.f32.xlu0 %v316
  %v318 = vpop.xlane.xlu0 %317
  %v319 = vsel %vm204, %v312, %v318
  %321 = vset.pattern.permute.xlu0 1
  %322 = vperm.xlu0 %321, %v189
  %v323 = vpop.permute.xlu0 %322
  %v325 = vadd.f32 %v319, %v323
  %v326 = vld [vmem:[%s0 + $0x1] sm:$0x1]
  %v327 = vadd.f32 %v325, %v326
  %vm328 = vcmask 8192
  %v329 = vsel %vm328, %v327, -inf
  %330 = vmax.xlane.f32.xlu0 %v329
  %v331 = vpop.xlane.xlu0 %330
  %vm332 = vcmp.ge.f32.partialorder %v327, %v331
  %v333 = vsel %vm332, %v201, 2
  %v334 = vsel %vm328, %v333, 2147483647
  %v335 = vand.u32 %v334, 65535
  %v336 = vshra.s32 %v334, 16
  %v337 = vcvt.s32.f32 %v335
  %v338 = vcvt.s32.f32 %v336
  %339 = vmin.xlane.f32.xlu0 %v338
  %v340 = vpop.xlane.xlu0 %339
  %vm341 = vcmp.eq.f32.partialorder %v338, %v340
  %v342 = vsel %vm341, %v337, inf
  %343 = vmin.xlane.f32.xlu0 %v342
  %v344 = vpop.xlane.xlu0 %343
  %v345 = vcvt.f32.s32 %v344
  %v346 = vcvt.f32.s32 %v340
  %v347 = vshll.u32 %v346, 16
  %v348 = vadd.s32 %v347, %v345
  %vm349 = vcmask 15360
  %v350 = vsel %vm349, %v325, 0.0
  %352 = vrot.lane.b32.xlu0 %v280, 32
  %v353 = vpop.permute.xlu0 %352
  %355 = vrot.lane.b32.xlu0 %v280, 64
  %v356 = vpop.permute.xlu0 %355
  %v358 = vsel %vm44, %v353, %v356
  %v359 = vpack.c.bf16 %v358, %v358
  %v361 = vsel %vm92, %v359, 0
  %363 = vmatpush.bf16.msra.mxu0 0
  %364 = vmatpush.bf16.msra.mxu0 0
  %365 = vmatpush.bf16.msra.mxu0 0
  %366 = vmatpush.bf16.msra.mxu0 0
  %367 = vmatpush.bf16.msra.mxu0 %v77
  %368 = vmatpush.bf16.msra.mxu0 %v75
  %369 = vmatpush.bf16.msra.mxu0 %v73
  %370 = vmatpush.bf16.msra.mxu0 %v71
  %371 = vmatmul.bf16.gmra.mxu0 %v361
  %v372 = vpop.f32.mrf.mxu0
  %v373 = vadd.f32 %v88, %v372
  %v374 = vpop.f32.mrf.mxu0
  %375 = vdwg.mxu0
  %376 = vmatpush.bf16.msra.mxu0 0
  %377 = vmatpush.bf16.msra.mxu0 0
  %378 = vmatpush.bf16.msra.mxu0 0
  %379 = vmatpush.bf16.msra.mxu0 0
  %380 = vmatpush.bf16.msra.mxu0 %v78
  %381 = vmatpush.bf16.msra.mxu0 %v76
  %382 = vmatpush.bf16.msra.mxu0 %v74
  %383 = vmatpush.bf16.msra.mxu0 %v72
  %384 = vmatmul.bf16.gmra.mxu0 %v361
  %v385 = vpop.f32.mrf.mxu0
  %v386 = vadd.f32 %v89, %v385
  %v387 = vpop.f32.mrf.mxu0
  %388 = vdwg.mxu0
  %v389 = vxor.u32 %v373, 2147483648
  %v390 = vmul.f32 %v389, 1.442695
  %v391 = vpow.pop %v390
  %v392 = vadd.f32 %v391, 1.0
  %v393 = vrcp.pop %v392
  %v394 = vmul.f32 %v392, %v393
  %v395 = vsub.f32 1.0, %v394
  %v396 = vmul.f32 %v393, %v395
  %v397 = vadd.f32 %v393, %v396
  %vm398 = vweird.f32 %v392
  %vm399 = vweird.f32 %v393
  %vm400 = vmor %vm398, %vm399
  %v401 = vsel %vm400, %v393, %v397
  %v402 = vand.u32 2147483647, %v392
  %vm403 = vcmp.eq.f32.partialorder %v402, 8.507059e+37
  %v404 = vand.u32 %v392, 2147483648
  %v405 = vor.u32 1.1754944e-38, %v404
  %v406 = vsel %vm403, %v405, %v401
  %v407 = vmul.f32 1.0, %v406
  %v408 = vtanh.pop %v373
  %v409 = vmul.f32 %v407, %v274
  %411 = vrot.lane.b32.xlu0 %v408, 64
  %v412 = vpop.permute.xlu0 %411
  %v414 = vmul.f32 %v407, %v412
  %416 = vrot.lane.b32.xlu0 %v414, 32
  %v417 = vpop.permute.xlu0 %416
  %v419 = vadd.f32 %v409, %v417
  %v420 = vtanh.pop %v419
  %422 = vrot.lane.b32.xlu0 %v420, 64
  %v423 = vpop.permute.xlu0 %422
  %v425 = vmul.f32 %v407, %v423
  %427 = vrot.lane.b32.xlu0 %v419, 96
  %v428 = vpop.permute.xlu0 %427
  %v429 = vsel %vm44, %v428, 0
  %431 = vmatpush.msra.mxu0 0.0
  %432 = vmatpush.msra.mxu0 0.0
  %433 = vmatpush.msra.mxu0 0.0
  %434 = vmatpush.msra.mxu0 0.0
  %435 = vmatpush.msra.mxu0 0.0
  %436 = vmatpush.msra.mxu0 0.0
  %437 = vmatpush.msra.mxu0 0.0
  %438 = vmatpush.msra.mxu0 0.0
  %439 = vmatpush.msra.mxu0 0.0
  %440 = vmatpush.msra.mxu0 0.0
  %441 = vmatpush.msra.mxu0 0.0
  %442 = vmatpush.msra.mxu0 0.0
  %443 = vmatpush.msra.mxu0 %v38
  %444 = vmatpush.msra.mxu0 %v37
  %445 = vmatpush.msra.mxu0 %v36
  %446 = vmatpush.msra.mxu0 %v35
  %447 = vmatmul.f32.gmra.mxu0 %v429
  %v448 = vpop.f32.mrf.mxu0
  %v449 = vadd.f32 %v39, %v448
  %450 = vdwg.mxu0
  %v451 = vld [vmem:[%s4 + $0x23] sm:$0x1]
  %v452 = vadd.f32 %v386, %v186
  %v453 = vtanh.pop %v452
  %v454 = vmul.f32 %v453, %v451
  %v455 = vsel %vm193, %v454, 0.0
  %456 = vadd.xlane.f32.xlu0 %v455
  %v457 = vpop.xlane.xlu0 %456
  %v458 = vadd.f32 %v386, %v304
  %v459 = vtanh.pop %v458
  %v460 = vmul.f32 %v459, %v451
  %v461 = vsel %vm193, %v460, 0.0
  %462 = vadd.xlane.f32.xlu0 %v461
  %v463 = vpop.xlane.xlu0 %462
  %v464 = vadd.f32 %v386, %v449
  %v465 = vtanh.pop %v464
  %v466 = vmul.f32 %v465, %v451
  %v467 = vsel %vm193, %v466, 0.0
  %468 = vadd.xlane.f32.xlu0 %v467
  %v469 = vpop.xlane.xlu0 %468
  %v470 = vsel %vm204, %v457, %v463
  %v471 = vsel %vm349, %v470, %v469
  %472 = vset.pattern.permute.xlu0 2
  %473 = vperm.xlu0 %472, %v189
  %v474 = vpop.permute.xlu0 %473
  %v476 = vadd.f32 %v471, %v474
  %v477 = vld [vmem:[%s0 + $0x2] sm:$0x1]
  %v478 = vadd.f32 %v476, %v477
  %vm479 = vcmask 16384
  %v480 = vsel %vm479, %v478, -inf
  %481 = vmax.xlane.f32.xlu0 %v480
  %v482 = vpop.xlane.xlu0 %481
  %vm483 = vcmp.ge.f32.partialorder %v478, %v482
  %v484 = vsel %vm483, %v201, 3
  %v485 = vsel %vm479, %v484, 2147483647
  %v486 = vand.u32 %v485, 65535
  %v487 = vshra.s32 %v485, 16
  %v488 = vcvt.s32.f32 %v486
  %v489 = vcvt.s32.f32 %v487
  %490 = vmin.xlane.f32.xlu0 %v489
  %v491 = vpop.xlane.xlu0 %490
  %vm492 = vcmp.eq.f32.partialorder %v489, %v491
  %v493 = vsel %vm492, %v488, inf
  %494 = vmin.xlane.f32.xlu0 %v493
  %v495 = vpop.xlane.xlu0 %494
  %v496 = vcvt.f32.s32 %v495
  %v497 = vcvt.f32.s32 %v491
  %v498 = vshll.u32 %v497, 16
  %v499 = vadd.s32 %v498, %v496
  %vm500 = vcmask 23552
  %v501 = vsel %vm500, %v476, 0.0
  %503 = vrot.lane.b32.xlu0 %v425, 32
  %v504 = vpop.permute.xlu0 %503
  %506 = vrot.lane.b32.xlu0 %v425, 64
  %v507 = vpop.permute.xlu0 %506
  %v509 = vsel %vm44, %v504, %v507
  %v510 = vpack.c.bf16 %v509, %v509
  %v512 = vsel %vm92, %v510, 0
  %514 = vmatpush.bf16.msra.mxu0 0
  %515 = vmatpush.bf16.msra.mxu0 0
  %516 = vmatpush.bf16.msra.mxu0 0
  %517 = vmatpush.bf16.msra.mxu0 0
  %518 = vmatpush.bf16.msra.mxu0 %v77
  %519 = vmatpush.bf16.msra.mxu0 %v75
  %520 = vmatpush.bf16.msra.mxu0 %v73
  %521 = vmatpush.bf16.msra.mxu0 %v71
  %522 = vmatmul.bf16.gmra.mxu0 %v512
  %v523 = vpop.f32.mrf.mxu0
  %v524 = vadd.f32 %v88, %v523
  %v525 = vpop.f32.mrf.mxu0
  %526 = vdwg.mxu0
  %v527 = vxor.u32 %v524, 2147483648
  %v528 = vmul.f32 %v527, 1.442695
  %v529 = vpow.pop %v528
  %v530 = vadd.f32 %v529, 1.0
  %v531 = vrcp.pop %v530
  %v532 = vmul.f32 %v530, %v531
  %v533 = vsub.f32 1.0, %v532
  %v534 = vmul.f32 %v531, %v533
  %v535 = vadd.f32 %v531, %v534
  %vm536 = vweird.f32 %v530
  %vm537 = vweird.f32 %v531
  %vm538 = vmor %vm536, %vm537
  %v539 = vsel %vm538, %v531, %v535
  %v540 = vand.u32 2147483647, %v530
  %vm541 = vcmp.eq.f32.partialorder %v540, 8.507059e+37
  %v542 = vand.u32 %v530, 2147483648
  %v543 = vor.u32 1.1754944e-38, %v542
  %v544 = vsel %vm541, %v543, %v539
  %v545 = vmul.f32 1.0, %v544
  %v546 = vtanh.pop %v524
  %v547 = vmul.f32 %v545, %v419
  %549 = vrot.lane.b32.xlu0 %v546, 64
  %v550 = vpop.permute.xlu0 %549
  %v552 = vmul.f32 %v545, %v550
  %554 = vrot.lane.b32.xlu0 %v552, 32
  %v555 = vpop.permute.xlu0 %554
  %v557 = vadd.f32 %v547, %v555
  %v558 = vtanh.pop %v557
  %560 = vrot.lane.b32.xlu0 %v558, 64
  %v561 = vpop.permute.xlu0 %560
  %v563 = vmul.f32 %v545, %v561
  %v564 = vld [vmem:[%s4 + $0x25] sm:$0xff]
  %v565 = vld [vmem:[%s4 + $0x2d] sm:$0xff]
  %v566 = vld [vmem:[%s4 + $0x35] sm:$0xff]
  %v567 = vld [vmem:[%s4 + $0x3d] sm:$0xff]
  %v568 = vld [vmem:[%s4 + $0x85] sm:$0x1]
  %570 = vrot.lane.b32.xlu0 %v557, 96
  %v571 = vpop.permute.xlu0 %570
  %v572 = vsel %vm44, %v571, 0
  %574 = vmatpush.msra.mxu0 0.0
  %575 = vmatpush.msra.mxu0 0.0
  %576 = vmatpush.msra.mxu0 0.0
  %577 = vmatpush.msra.mxu0 0.0
  %578 = vmatpush.msra.mxu0 0.0
  %579 = vmatpush.msra.mxu0 0.0
  %580 = vmatpush.msra.mxu0 0.0
  %581 = vmatpush.msra.mxu0 0.0
  %582 = vmatpush.msra.mxu0 0.0
  %583 = vmatpush.msra.mxu0 0.0
  %584 = vmatpush.msra.mxu0 0.0
  %585 = vmatpush.msra.mxu0 0.0
  %586 = vmatpush.msra.mxu0 %v567
  %587 = vmatpush.msra.mxu0 %v566
  %588 = vmatpush.msra.mxu0 %v565
  %589 = vmatpush.msra.mxu0 %v564
  %590 = vmatmul.f32.gmra.mxu0 %v572
  %v591 = vpop.f32.mrf.mxu0
  %v592 = vadd.f32 %v568, %v591
  %593 = vdwg.mxu0
  %v594 = vld [vmem:[%s0 + $0x3] sm:$0x1]
  %v595 = vadd.f32 %v592, %v594
  %vm596 = vcmask 32768
  %v597 = vsel %vm596, %v595, -inf
  %598 = vmax.xlane.f32.xlu0 %v597
  %v599 = vpop.xlane.xlu0 %598
  %vm600 = vcmp.ge.f32.partialorder %v595, %v599
  %v601 = vsel %vm600, %v201, 5
  %v602 = vsel %vm596, %v601, 2147483647
  %v603 = vand.u32 %v602, 65535
  %v604 = vshra.s32 %v602, 16
  %v605 = vcvt.s32.f32 %v603
  %v606 = vcvt.s32.f32 %v604
  %607 = vmin.xlane.f32.xlu0 %v606
  %v608 = vpop.xlane.xlu0 %607
  %vm609 = vcmp.eq.f32.partialorder %v606, %v608
  %v610 = vsel %vm609, %v605, inf
  %611 = vmin.xlane.f32.xlu0 %v610
  %v612 = vpop.xlane.xlu0 %611
  %v613 = vcvt.f32.s32 %v612
  %v614 = vcvt.f32.s32 %v608
  %v615 = vshll.u32 %v614, 16
  %v616 = vadd.s32 %v615, %v613
  %vm617 = vcmask 39936
  %v618 = vsel %vm617, %v592, 0.0
  %v619 = vld [vmem:[%s4 + $0x88] sm:$0x1f]
  %v620 = vlaneseq
  %v621 = vshrl.u32 %v620, 7
  %v622 = vperm.slane %v616, 0
  %vm623 = vcmp.eq.s32.totalorder %v621, %v622
  %v624 = vsel %vm623, 1, 0
  %vm625 = vcmp.eq.s32.totalorder %v624, 1
  %v626 = vsel %vm625, %v619, 0.0
  %vm627 = vcmask 258048
  %v628 = vsel %vm627, %v626, 0.0
  %v629 = vrot.slane %v628, 4
  %v630 = vadd.f32 %v628, %v629
  %v631 = vrot.slane %v630, 2
  %v632 = vadd.f32 %v630, %v631
  %v633 = vrot.slane %v632, 1
  %v634 = vadd.f32 %v632, %v633
  %636 = vrot.lane.b32.xlu0 %v563, 64
  %v637 = vpop.permute.xlu0 %636
  %v639 = vsel %vm44, %v634, %v637
  %v640 = vpack.c.bf16 %v639, %v639
  %v642 = vsel %vm92, %v640, 0
  %644 = vmatpush.bf16.msra.mxu0 0
  %645 = vmatpush.bf16.msra.mxu0 0
  %646 = vmatpush.bf16.msra.mxu0 0
  %647 = vmatpush.bf16.msra.mxu0 0
  %648 = vmatpush.bf16.msra.mxu0 %v77
  %649 = vmatpush.bf16.msra.mxu0 %v75
  %650 = vmatpush.bf16.msra.mxu0 %v73
  %651 = vmatpush.bf16.msra.mxu0 %v71
  %652 = vmatmul.bf16.gmra.mxu0 %v642
  %v653 = vpop.f32.mrf.mxu0
  %v654 = vadd.f32 %v88, %v653
  %v655 = vpop.f32.mrf.mxu0
  %656 = vdwg.mxu0
  %v657 = vxor.u32 %v654, 2147483648
  %v658 = vmul.f32 %v657, 1.442695
  %v659 = vpow.pop %v658
  %v660 = vadd.f32 %v659, 1.0
  %v661 = vrcp.pop %v660
  %v662 = vmul.f32 %v660, %v661
  %v663 = vsub.f32 1.0, %v662
  %v664 = vmul.f32 %v661, %v663
  %v665 = vadd.f32 %v661, %v664
  %vm666 = vweird.f32 %v660
  %vm667 = vweird.f32 %v661
  %vm668 = vmor %vm666, %vm667
  %v669 = vsel %vm668, %v661, %v665
  %v670 = vand.u32 2147483647, %v660
  %vm671 = vcmp.eq.f32.partialorder %v670, 8.507059e+37
  %v672 = vand.u32 %v660, 2147483648
  %v673 = vor.u32 1.1754944e-38, %v672
  %v674 = vsel %vm671, %v673, %v669
  %v675 = vmul.f32 1.0, %v674
  %v676 = vtanh.pop %v654
  %v677 = vmul.f32 %v675, %v557
  %679 = vrot.lane.b32.xlu0 %v676, 64
  %v680 = vpop.permute.xlu0 %679
  %v682 = vmul.f32 %v675, %v680
  %684 = vrot.lane.b32.xlu0 %v682, 32
  %v685 = vpop.permute.xlu0 %684
  %v687 = vadd.f32 %v677, %v685
  %v688 = vtanh.pop %v687
  %690 = vrot.lane.b32.xlu0 %v688, 64
  %v691 = vpop.permute.xlu0 %690
  %v693 = vmul.f32 %v675, %v691
  %v694 = vld [vmem:[%s4 + $0x45] sm:$0xff]
  %v695 = vld [vmem:[%s4 + $0x4d] sm:$0xff]
  %v696 = vld [vmem:[%s4 + $0x55] sm:$0xff]
  %v697 = vld [vmem:[%s4 + $0x5d] sm:$0xff]
  %v698 = vld [vmem:[%s4 + $0x86] sm:$0x1]
  %700 = vrot.lane.b32.xlu0 %v687, 96
  %v701 = vpop.permute.xlu0 %700
  %v702 = vsel %vm44, %v701, 0
  %704 = vmatpush.msra.mxu0 0.0
  %705 = vmatpush.msra.mxu0 0.0
  %706 = vmatpush.msra.mxu0 0.0
  %707 = vmatpush.msra.mxu0 0.0
  %708 = vmatpush.msra.mxu0 0.0
  %709 = vmatpush.msra.mxu0 0.0
  %710 = vmatpush.msra.mxu0 0.0
  %711 = vmatpush.msra.mxu0 0.0
  %712 = vmatpush.msra.mxu0 0.0
  %713 = vmatpush.msra.mxu0 0.0
  %714 = vmatpush.msra.mxu0 0.0
  %715 = vmatpush.msra.mxu0 0.0
  %716 = vmatpush.msra.mxu0 %v697
  %717 = vmatpush.msra.mxu0 %v696
  %718 = vmatpush.msra.mxu0 %v695
  %719 = vmatpush.msra.mxu0 %v694
  %720 = vmatmul.f32.gmra.mxu0 %v702
  %v721 = vpop.f32.mrf.mxu0
  %v722 = vadd.f32 %v698, %v721
  %723 = vdwg.mxu0
  %v724 = vld [vmem:[%s0 + $0x4] sm:$0x1]
  %v725 = vadd.f32 %v722, %v724
  %v726 = vsel %vm596, %v725, -inf
  %727 = vmax.xlane.f32.xlu0 %v726
  %v728 = vpop.xlane.xlu0 %727
  %vm729 = vcmp.ge.f32.partialorder %v725, %v728
  %v730 = vsel %vm729, %v201, 5
  %v731 = vsel %vm596, %v730, 2147483647
  %v732 = vand.u32 %v731, 65535
  %v733 = vshra.s32 %v731, 16
  %v734 = vcvt.s32.f32 %v732
  %v735 = vcvt.s32.f32 %v733
  %736 = vmin.xlane.f32.xlu0 %v735
  %v737 = vpop.xlane.xlu0 %736
  %vm738 = vcmp.eq.f32.partialorder %v735, %v737
  %v739 = vsel %vm738, %v734, inf
  %740 = vmin.xlane.f32.xlu0 %v739
  %v741 = vpop.xlane.xlu0 %740
  %v742 = vcvt.f32.s32 %v741
  %v743 = vcvt.f32.s32 %v737
  %v744 = vshll.u32 %v743, 16
  %v745 = vadd.s32 %v744, %v742
  %v746 = vsel %vm617, %v722, 0.0
  %v747 = vld [vmem:[%s4 + $0x8d] sm:$0x1f]
  %v748 = vperm.slane %v745, 0
  %vm749 = vcmp.eq.s32.totalorder %v621, %v748
  %v750 = vsel %vm749, 1, 0
  %vm751 = vcmp.eq.s32.totalorder %v750, 1
  %v752 = vsel %vm751, %v747, 0.0
  %v753 = vsel %vm627, %v752, 0.0
  %v754 = vrot.slane %v753, 4
  %v755 = vadd.f32 %v753, %v754
  %v756 = vrot.slane %v755, 2
  %v757 = vadd.f32 %v755, %v756
  %v758 = vrot.slane %v757, 1
  %v759 = vadd.f32 %v757, %v758
  %761 = vrot.lane.b32.xlu0 %v693, 64
  %v762 = vpop.permute.xlu0 %761
  %v764 = vsel %vm44, %v759, %v762
  %v765 = vpack.c.bf16 %v764, %v764
  %v767 = vsel %vm92, %v765, 0
  %769 = vmatpush.bf16.msra.mxu0 0
  %770 = vmatpush.bf16.msra.mxu0 0
  %771 = vmatpush.bf16.msra.mxu0 0
  %772 = vmatpush.bf16.msra.mxu0 0
  %773 = vmatpush.bf16.msra.mxu0 %v77
  %774 = vmatpush.bf16.msra.mxu0 %v75
  %775 = vmatpush.bf16.msra.mxu0 %v73
  %776 = vmatpush.bf16.msra.mxu0 %v71
  %777 = vmatmul.bf16.gmra.mxu0 %v767
  %v778 = vpop.f32.mrf.mxu0
  %v779 = vadd.f32 %v88, %v778
  %v780 = vpop.f32.mrf.mxu0
  %781 = vdwg.mxu0
  %v782 = vxor.u32 %v779, 2147483648
  %v783 = vmul.f32 %v782, 1.442695
  %v784 = vpow.pop %v783
  %v785 = vadd.f32 %v784, 1.0
  %v786 = vrcp.pop %v785
  %v787 = vmul.f32 %v785, %v786
  %v788 = vsub.f32 1.0, %v787
  %v789 = vmul.f32 %v786, %v788
  %v790 = vadd.f32 %v786, %v789
  %vm791 = vweird.f32 %v785
  %vm792 = vweird.f32 %v786
  %vm793 = vmor %vm791, %vm792
  %v794 = vsel %vm793, %v786, %v790
  %v795 = vand.u32 2147483647, %v785
  %vm796 = vcmp.eq.f32.partialorder %v795, 8.507059e+37
  %v797 = vand.u32 %v785, 2147483648
  %v798 = vor.u32 1.1754944e-38, %v797
  %v799 = vsel %vm796, %v798, %v794
  %v800 = vmul.f32 1.0, %v799
  %v801 = vtanh.pop %v779
  %v802 = vmul.f32 %v800, %v687
  %804 = vrot.lane.b32.xlu0 %v801, 64
  %v805 = vpop.permute.xlu0 %804
  %v807 = vmul.f32 %v800, %v805
  %809 = vrot.lane.b32.xlu0 %v807, 32
  %v810 = vpop.permute.xlu0 %809
  %v812 = vadd.f32 %v802, %v810
  %v813 = vtanh.pop %v812
  %815 = vrot.lane.b32.xlu0 %v813, 64
  %v816 = vpop.permute.xlu0 %815
  %v818 = vmul.f32 %v800, %v816
  %v819 = vld [vmem:[%s4 + $0x65] sm:$0xff]
  %v820 = vld [vmem:[%s4 + $0x6d] sm:$0xff]
  %v821 = vld [vmem:[%s4 + $0x75] sm:$0xff]
  %v822 = vld [vmem:[%s4 + $0x7d] sm:$0xff]
  %v823 = vld [vmem:[%s4 + $0x87] sm:$0x1]
  %825 = vrot.lane.b32.xlu0 %v812, 96
  %v826 = vpop.permute.xlu0 %825
  %v827 = vsel %vm44, %v826, 0
  %829 = vmatpush.msra.mxu0 0.0
  %830 = vmatpush.msra.mxu0 0.0
  %831 = vmatpush.msra.mxu0 0.0
  %832 = vmatpush.msra.mxu0 0.0
  %833 = vmatpush.msra.mxu0 0.0
  %834 = vmatpush.msra.mxu0 0.0
  %835 = vmatpush.msra.mxu0 0.0
  %836 = vmatpush.msra.mxu0 0.0
  %837 = vmatpush.msra.mxu0 0.0
  %838 = vmatpush.msra.mxu0 0.0
  %839 = vmatpush.msra.mxu0 0.0
  %840 = vmatpush.msra.mxu0 0.0
  %841 = vmatpush.msra.mxu0 %v822
  %842 = vmatpush.msra.mxu0 %v821
  %843 = vmatpush.msra.mxu0 %v820
  %844 = vmatpush.msra.mxu0 %v819
  %845 = vmatmul.f32.gmra.mxu0 %v827
  %v846 = vpop.f32.mrf.mxu0
  %v847 = vadd.f32 %v823, %v846
  %848 = vdwg.mxu0
  %v849 = vld [vmem:[%s0 + $0x5] sm:$0x1]
  %v850 = vadd.f32 %v847, %v849
  %v851 = vsel %vm596, %v850, -inf
  %852 = vmax.xlane.f32.xlu0 %v851
  %v853 = vpop.xlane.xlu0 %852
  %vm854 = vcmp.ge.f32.partialorder %v850, %v853
  %v855 = vsel %vm854, %v201, 5
  %v856 = vsel %vm596, %v855, 2147483647
  %v857 = vand.u32 %v856, 65535
  %v858 = vshra.s32 %v856, 16
  %v859 = vcvt.s32.f32 %v857
  %v860 = vcvt.s32.f32 %v858
  %861 = vmin.xlane.f32.xlu0 %v860
  %v862 = vpop.xlane.xlu0 %861
  %vm863 = vcmp.eq.f32.partialorder %v860, %v862
  %v864 = vsel %vm863, %v859, inf
  %865 = vmin.xlane.f32.xlu0 %v864
  %v866 = vpop.xlane.xlu0 %865
  %v867 = vcvt.f32.s32 %v866
  %v868 = vcvt.f32.s32 %v862
  %v869 = vshll.u32 %v868, 16
  %v870 = vadd.s32 %v869, %v867
  %v871 = vsel %vm617, %v847, 0.0
  %v873 = vrot.slane %v818, 7
  %v875 = vrot.slane %v812, 6
  %876 = vrot.lane.b32.xlu0 %v875, 64
  %v877 = vpop.permute.xlu0 %876
  %v880 = vrot.slane %v186, 5
  %881 = vrot.lane.b32.xlu0 %v880, 96
  %v882 = vpop.permute.xlu0 %881
  %v885 = vrot.slane %v304, 4
  %886 = vrot.lane.b32.xlu0 %v885, 96
  %v887 = vpop.permute.xlu0 %886
  %v890 = vrot.slane %v449, 3
  %891 = vrot.lane.b32.xlu0 %v890, 96
  %v892 = vpop.permute.xlu0 %891
  %v895 = vrot.slane %v205, 2
  %896 = vrot.lane.b32.xlu0 %v895, 96
  %v897 = vpop.permute.xlu0 %896
  %v900 = vrot.slane %v350, 1
  %901 = vrot.lane.b32.xlu0 %v900, 96
  %v902 = vpop.permute.xlu0 %901
  %905 = vrot.lane.b32.xlu0 %v501, 96
  %v906 = vpop.permute.xlu0 %905
  %v909 = vrot.slane %v618, 7
  %910 = vrot.lane.b32.xlu0 %v909, 96
  %v911 = vpop.permute.xlu0 %910
  %v914 = vrot.slane %v746, 6
  %915 = vrot.lane.b32.xlu0 %v914, 96
  %v916 = vpop.permute.xlu0 %915
  %v919 = vrot.slane %v871, 5
  %920 = vrot.lane.b32.xlu0 %v919, 96
  %v921 = vpop.permute.xlu0 %920
  %vm923 = vcmask 1040384
  %v924 = vsel %vm923, %v818, %v873
  %vm925 = vcmask 1041408
  %v926 = vsel %vm925, %v924, %v877
  %vm927 = vcmask 1042432
  %v928 = vsel %vm927, %v926, %v882
  %vm929 = vcmask 1043456
  %v930 = vsel %vm929, %v928, %v887
  %vm931 = vcmask 1044480
  %v932 = vsel %vm931, %v930, %v892
  %vm933 = vcmask 1045504
  %v934 = vsel %vm933, %v932, %v897
  %vm935 = vcmask 1046528
  %v936 = vsel %vm935, %v934, %v902
  %v937 = vsel %vm923, %v906, %v911
  %v938 = vsel %vm925, %v937, %v916
  %v939 = vsel %vm927, %v938, %v921
  %942 = vrot.lane.b32.xlu0 %v936, 32
  %v943 = vpop.permute.xlu0 %942
  %944 = vrot.lane.b32.xlu0 %v939, 32
  %v945 = vpop.permute.xlu0 %944
  %948 = vst.msk [vmem:[%s5] sm:$0xff] %vm44, %v943
  %vm949 = vcmask 257024
  %950 = vst.msk [vmem:[%s5 + $0x8] sm:$0xf] %vm949, %v945
  %v951 = vsel %vm204, %v203, %v348
  %v952 = vsel %vm349, %v951, %v499
  %v953 = vsel %vm500, %v952, %v616
  %vm954 = vcmask 31744
  %v955 = vsel %vm954, %v953, %v745
  %v956 = vsel %vm617, %v955, %v870
  %vm957 = vcmask 40960
  %958 = vst.msk [vmem:[%s6] sm:$0x1] %vm957, %v956
  // Predicated region
  $region22: #{_forward.1} parent=0 // pred_check
    _
  $region23: #{_forward.1} parent=0 // pred_check_branch
    %960 = sbr.rel (0) target = $region25
  $region24: #{_forward.1} parent=0 // pred_region
    _
  $region25: #{_forward.1} parent=0 // pred_fallthru
    _
  // Predicated region
  $region26: #{_forward.1} parent=0 // pred_check
    _
  $region27: #{_forward.1} parent=0 // pred_check_branch
    %962 = sbr.rel (0) target = $region29
  $region28: #{_forward.1} parent=0 // pred_region
    _
  $region29: #{_forward.1} parent=0 // pred_fallthru
    _
  // Predicated region
  $region30: #{_forward.1} parent=0 // pred_check
    _
  $region31: #{_forward.1} parent=0 // pred_check_branch
    %964 = sbr.rel (0) target = $region33
  $region32: #{_forward.1} parent=0 // pred_region
    _
  $region33: #{_forward.1} parent=0 // pred_fallthru
    _
  // Predicated region
  $region34: #{_forward.1} parent=0 // pred_check
    _
  $region35: #{_forward.1} parent=0 // pred_check_branch
    %966 = sbr.rel (0) target = $region37
  $region36: #{_forward.1} parent=0 // pred_region
    _
  $region37: #{_forward.1} parent=0 // pred_fallthru
    _

</llo_original>
